<compile_context>
chip_gen: v7x
topology: tpu7x:2x2x1
jax: 0.10.0
libtpu: 0.0.40
codegen_flags: <defaults>
</compile_context>

<pallas_src>
import jax
import jax.numpy as jnp
from jax.experimental import pallas as pl
from jax.experimental.pallas import tpu as pltpu


def gru_fc_kernel(x2_ref, h0_ref, w_ih_ref, w_hh_ref, w_fc_ref,
                  b_ih_ref, b_hh_ref, b_fc_ref,
                  logits_ref, h_final_ref,
                  gi_ref, hseq_ref):
    """Whole T-step GRU recurrence + FC head in one kernel invocation.

    x2_ref:   (T*B, F)   bf16   flattened input sequence
    h0_ref:   (B, H)     f32    initial hidden state
    w_ih_ref: (F, 3H)    bf16   [W_ir|W_iz|W_in]^T
    w_hh_ref: (H, 3H)    f32    [W_hr|W_hz|W_hn]^T   (f32: recurrent path)
    w_fc_ref: (H, C)     bf16   W_fc^T
    gi_ref:   (T*B, 3H)  f32    scratch: x-side gate pre-activations
    hseq_ref: (T*B, H)   f32    scratch: per-step hidden states
    """
    TB = x2_ref.shape[0]
    B, H = h0_ref.shape
    T = TB // B

    # ---- Phase 1 (parallel, off the serial chain): all x-dependent gate
    # pre-activations in one batched (T*B, F) @ (F, 3H) MXU matmul.
    gi_ref[...] = (
        jnp.dot(x2_ref[...], w_ih_ref[...], preferred_element_type=jnp.float32)
        + b_ih_ref[...])

    # ---- Phase 2 (serial recurrence): one fused h @ [W_hr|W_hz|W_hn] matmul
    # per step.  Weights / bias broadcast hoisted out of the loop; the carried
    # hidden state stays f32 (no compounding bf16 rounding).
    w_hh = w_hh_ref[...]                                    # (H, 3H), resident
    b_hh = jnp.broadcast_to(b_hh_ref[...], (B, 3 * H))      # hoisted broadcast

    def step(t, h):
        row = pl.multiple_of(t * B, B)
        gi_t = gi_ref[pl.ds(row, B), :]                     # (B, 3H)
        gh = jnp.dot(h, w_hh, preferred_element_type=jnp.float32) + b_hh
        r = jax.nn.sigmoid(gi_t[:, :H] + gh[:, :H])
        z = jax.nn.sigmoid(gi_t[:, H:2 * H] + gh[:, H:2 * H])
        n = jnp.tanh(gi_t[:, 2 * H:] + r * gh[:, 2 * H:])
        h_new = (1.0 - z) * n + z * h
        hseq_ref[pl.ds(row, B), :] = h_new                  # for the FC epilogue
        return h_new

    h_final_ref[...] = jax.lax.fori_loop(0, T, step, h0_ref[...], unroll=True)

    # ---- Phase 3 (parallel epilogue): batched FC head over all T*B rows,
    # removed from the per-step serial chain.
    logits_ref[...] = (
        jnp.dot(hseq_ref[...].astype(jnp.bfloat16), w_fc_ref[...],
                preferred_element_type=jnp.float32)
        + b_fc_ref[...])


@jax.jit
def full_layer_forward_seq(x_seq, h0, w_ih_t, w_hh_t, b_ih, b_hh, w_fc_t, b_fc):
    """Runs T consecutive Full_layer.forward steps in a single pallas_call.

    x_seq:  (T, B, F)  -- T successive inputs to Full_layer.forward
    h0:     (B, H)     -- initial hidden state (zeros for restart=True)
    Returns (logits_seq (T, B, C), h_final (B, H)).
    """
    T, B, F = x_seq.shape
    H = h0.shape[1]
    C = w_fc_t.shape[1]

    # bf16 for the feed-forward (non-recurrent) matmul operands; the recurrent
    # W_hh stays f32 so hidden-state rounding error does not compound.
    x2 = x_seq.reshape(T * B, F).astype(jnp.bfloat16)
    w_ih = w_ih_t.astype(jnp.bfloat16)     # (F, 3H)
    w_fc = w_fc_t.astype(jnp.bfloat16)     # (H, C)

    flops = 2 * T * B * (F * 3 * H + H * 3 * H + H * C)
    transcendentals = T * B * 3 * H
    bytes_accessed = (x2.size * 2 + w_ih.size * 2 + w_fc.size * 2
                      + w_hh_t.size * 4
                      + (b_ih.size + b_hh.size + b_fc.size) * 4
                      + T * B * C * 4 + 2 * B * H * 4)

    vmem_spec = pl.BlockSpec(memory_space=pltpu.MemorySpace.VMEM)

    logits2, h_final = pl.pallas_call(
        gru_fc_kernel,
        out_shape=(jax.ShapeDtypeStruct((T * B, C), jnp.float32),
                   jax.ShapeDtypeStruct((B, H), jnp.float32)),
        in_specs=[vmem_spec] * 8,
        out_specs=(vmem_spec, vmem_spec),
        scratch_shapes=[pltpu.VMEM((T * B, 3 * H), jnp.float32),   # gi (x-side)
                        pltpu.VMEM((T * B, H), jnp.float32)],      # h_t history
        cost_estimate=pl.CostEstimate(flops=flops,
                                      transcendentals=transcendentals,
                                      bytes_accessed=bytes_accessed),
    )(x2, h0, w_ih, w_hh_t, w_fc, b_ih, b_hh, b_fc)

    return logits2.reshape(T, B, C), h_final


def _reference(x_seq, h0, w_ih_t, w_hh_t, b_ih, b_hh, w_fc_t, b_fc):
    """Pure-JAX GRU + fc reference (f32 math, same weight values)."""
    H = h0.shape[1]

    def step(h, x):
        gi = x @ w_ih_t + b_ih
        gh = h @ w_hh_t + b_hh
        r = jax.nn.sigmoid(gi[:, :H] + gh[:, :H])
        z = jax.nn.sigmoid(gi[:, H:2 * H] + gh[:, H:2 * H])
        n = jnp.tanh(gi[:, 2 * H:] + r * gh[:, 2 * H:])
        h_new = (1.0 - z) * n + z * h
        return h_new, h_new @ w_fc_t + b_fc

    h_final, logits = jax.lax.scan(step, h0, x_seq)
    return logits, h_final


if __name__ == "__main__":
    # Small, TPU-tile-aligned shapes consistent with the module.
    T = 6            # number of successive forward() steps folded into one call
    B = 8            # batch
    F = 128          # feature_num
    H = 128          # hidden_state_dim
    C = 128          # class_num

    key = jax.random.PRNGKey(0)
    kx, k1, k2, k3, k4, k5, k6 = jax.random.split(key, 7)

    x_seq = jax.random.normal(kx, (T, B, F), dtype=jnp.float32)

    # PyTorch GRU/Linear-style U(-1/sqrt(H), 1/sqrt(H)) init, pre-transposed so
    # every matmul is (rows, K) @ (K, N). Gate column order: r, z, n.
    bound = 1.0 / jnp.sqrt(jnp.float32(H))
    w_ih_t = jax.random.uniform(k1, (F, 3 * H), jnp.float32, -bound, bound)   # W_ih^T
    w_hh_t = jax.random.uniform(k2, (H, 3 * H), jnp.float32, -bound, bound)   # W_hh^T
    b_ih = jax.random.uniform(k3, (1, 3 * H), jnp.float32, -bound, bound)
    b_hh = jax.random.uniform(k4, (1, 3 * H), jnp.float32, -bound, bound)
    w_fc_t = jax.random.uniform(k5, (H, C), jnp.float32, -bound, bound)       # W_fc^T
    b_fc = jax.random.uniform(k6, (1, C), jnp.float32, -bound, bound)

    # restart=True on step 0: hidden starts at zeros (torch.zeros(1, B, H)).
    h0 = jnp.zeros((B, H), dtype=jnp.float32)

    logits_seq, h_final = full_layer_forward_seq(
        x_seq, h0, w_ih_t, w_hh_t, b_ih, b_hh, w_fc_t, b_fc)
    jax.block_until_ready((logits_seq, h_final))

    # Reference uses the same bf16-rounded values for the operands the kernel
    # rounds (x, W_ih, W_fc); the recurrent path (h, W_hh) is f32 in both.
    rnd = lambda a: a.astype(jnp.bfloat16).astype(jnp.float32)
    ref_logits, ref_h = _reference(rnd(x_seq), h0, rnd(w_ih_t), w_hh_t,
                                   b_ih, b_hh, rnd(w_fc_t), b_fc)

    assert jnp.allclose(logits_seq, ref_logits, atol=2e-2, rtol=2e-2), (
        float(jnp.max(jnp.abs(logits_seq - ref_logits))))
    assert jnp.allclose(h_final, ref_h, atol=2e-2, rtol=2e-2), (
        float(jnp.max(jnp.abs(h_final - ref_h))))

    print("KERNEL_OK")
</pallas_src>

<mosaic_0001>
module attributes {stable_mosaic.version = 11 : i64} {
  func.func @gru_fc_kernel(%arg0: memref<48x128xbf16, #tpu.memory_space<vmem>>, %arg1: memref<8x128xf32, #tpu.memory_space<vmem>>, %arg2: memref<128x384xbf16, #tpu.memory_space<vmem>>, %arg3: memref<128x384xf32, #tpu.memory_space<vmem>>, %arg4: memref<128x128xbf16, #tpu.memory_space<vmem>>, %arg5: memref<1x384xf32, #tpu.memory_space<vmem>>, %arg6: memref<1x384xf32, #tpu.memory_space<vmem>>, %arg7: memref<1x128xf32, #tpu.memory_space<vmem>>, %arg8: memref<48x128xf32, #tpu.memory_space<vmem>>, %arg9: memref<8x128xf32, #tpu.memory_space<vmem>>, %arg10: memref<48x384xf32, #tpu.memory_space<vmem>>, %arg11: memref<48x128xf32, #tpu.memory_space<vmem>>) attributes {dimension_semantics = [], scalar_prefetch = 0 : i64, scratch_operands = 2 : i64, tpu.core_type = #tpu.core_type<tc>} {
    %c0 = arith.constant 0 : index
    %c0_0 = arith.constant 0 : index
    %0 = vector.load %arg0[%c0, %c0_0] : memref<48x128xbf16, #tpu.memory_space<vmem>>, vector<48x128xbf16>
    %c0_1 = arith.constant 0 : index
    %c0_2 = arith.constant 0 : index
    %1 = vector.load %arg2[%c0_1, %c0_2] : memref<128x384xbf16, #tpu.memory_space<vmem>>, vector<128x384xbf16>
    %cst = arith.constant dense<0.000000e+00> : vector<48x384xf32>
    %2 = tpu.matmul %0, %1, %cst {dimension_numbers = #tpu.dot_dimension_numbers<[1], [0], [0], [1], [0, 0, 1, 1], [], []>} : vector<48x128xbf16>, vector<128x384xbf16>, vector<48x384xf32> -> vector<48x384xf32>
    %c0_3 = arith.constant 0 : index
    %c0_4 = arith.constant 0 : index
    %3 = vector.load %arg5[%c0_3, %c0_4] : memref<1x384xf32, #tpu.memory_space<vmem>>, vector<1x384xf32>
    %4 = vector.broadcast %3 : vector<1x384xf32> to vector<48x384xf32>
    %5 = arith.addf %2, %4 : vector<48x384xf32>
    %c0_5 = arith.constant 0 : index
    %c0_6 = arith.constant 0 : index
    %6 = vector.load %arg10[%c0_5, %c0_6] : memref<48x384xf32, #tpu.memory_space<vmem>>, vector<48x384xf32>
    tpu.vector_store %arg10[%c0_5, %c0_6], %5 {strides = array<i32>} : memref<48x384xf32, #tpu.memory_space<vmem>>, vector<48x384xf32>,
    %c0_7 = arith.constant 0 : index
    %c0_8 = arith.constant 0 : index
    %7 = vector.load %arg3[%c0_7, %c0_8] : memref<128x384xf32, #tpu.memory_space<vmem>>, vector<128x384xf32>
    %c0_9 = arith.constant 0 : index
    %c0_10 = arith.constant 0 : index
    %8 = vector.load %arg6[%c0_9, %c0_10] : memref<1x384xf32, #tpu.memory_space<vmem>>, vector<1x384xf32>
    %9 = vector.shape_cast %8 : vector<1x384xf32> to vector<1x384xf32>
    %10 = vector.broadcast %9 : vector<1x384xf32> to vector<8x384xf32>
    %c0_11 = arith.constant 0 : index
    %c0_12 = arith.constant 0 : index
    %11 = vector.load %arg1[%c0_11, %c0_12] : memref<8x128xf32, #tpu.memory_space<vmem>>, vector<8x128xf32>
    %c0_i32 = arith.constant 0 : i32
    %c8_i32 = arith.constant 8 : i32
    %12 = arith.muli %c0_i32, %c8_i32 : i32
    %13 = tpu.assume_multiple %12, 8 : i32
    %14 = arith.index_cast %13 : i32 to index
    %c0_13 = arith.constant 0 : index
    %15 = vector.load %arg10[%14, %c0_13] : memref<48x384xf32, #tpu.memory_space<vmem>>, vector<8x384xf32>
    %cst_14 = arith.constant dense<0.000000e+00> : vector<8x384xf32>
    %16 = tpu.matmul %11, %7, %cst_14 {dimension_numbers = #tpu.dot_dimension_numbers<[1], [0], [0], [1], [0, 0, 1, 1], [], []>} : vector<8x128xf32>, vector<128x384xf32>, vector<8x384xf32> -> vector<8x384xf32>
    %17 = arith.addf %16, %10 : vector<8x384xf32>
    %18 = vector.extract_strided_slice %15 {offsets = [0, 0], sizes = [8, 128], strides = [1, 1]} : vector<8x384xf32> to vector<8x128xf32>
    %19 = vector.extract_strided_slice %17 {offsets = [0, 0], sizes = [8, 128], strides = [1, 1]} : vector<8x384xf32> to vector<8x128xf32>
    %20 = arith.addf %18, %19 : vector<8x128xf32>
    %21 = arith.negf %20 : vector<8x128xf32>
    %22 = math.exp %21 : vector<8x128xf32>
    %cst_15 = arith.constant 1.000000e+00 : f32
    %23 = vector.broadcast %cst_15 : f32 to vector<8x128xf32>
    %24 = arith.addf %23, %22 : vector<8x128xf32>
    %25 = arith.divf %23, %24 : vector<8x128xf32>
    %26 = vector.extract_strided_slice %15 {offsets = [0, 128], sizes = [8, 128], strides = [1, 1]} : vector<8x384xf32> to vector<8x128xf32>
    %27 = vector.extract_strided_slice %17 {offsets = [0, 128], sizes = [8, 128], strides = [1, 1]} : vector<8x384xf32> to vector<8x128xf32>
    %28 = arith.addf %26, %27 : vector<8x128xf32>
    %29 = arith.negf %28 : vector<8x128xf32>
    %30 = math.exp %29 : vector<8x128xf32>
    %cst_16 = arith.constant 1.000000e+00 : f32
    %31 = vector.broadcast %cst_16 : f32 to vector<8x128xf32>
    %32 = arith.addf %31, %30 : vector<8x128xf32>
    %33 = arith.divf %31, %32 : vector<8x128xf32>
    %34 = vector.extract_strided_slice %15 {offsets = [0, 256], sizes = [8, 128], strides = [1, 1]} : vector<8x384xf32> to vector<8x128xf32>
    %35 = vector.extract_strided_slice %17 {offsets = [0, 256], sizes = [8, 128], strides = [1, 1]} : vector<8x384xf32> to vector<8x128xf32>
    %36 = arith.mulf %25, %35 : vector<8x128xf32>
    %37 = arith.addf %34, %36 : vector<8x128xf32>
    %38 = math.tanh %37 : vector<8x128xf32>
    %cst_17 = arith.constant 1.000000e+00 : f32
    %39 = vector.broadcast %cst_17 : f32 to vector<8x128xf32>
    %40 = arith.subf %39, %33 : vector<8x128xf32>
    %41 = arith.mulf %40, %38 : vector<8x128xf32>
    %42 = arith.mulf %33, %11 : vector<8x128xf32>
    %43 = arith.addf %41, %42 : vector<8x128xf32>
    %44 = arith.index_cast %13 : i32 to index
    %c0_18 = arith.constant 0 : index
    %45 = vector.load %arg11[%44, %c0_18] : memref<48x128xf32, #tpu.memory_space<vmem>>, vector<8x128xf32>
    tpu.vector_store %arg11[%44, %c0_18], %43 {strides = array<i32>} : memref<48x128xf32, #tpu.memory_space<vmem>>, vector<8x128xf32>,
    %c1_i32 = arith.constant 1 : i32
    %c8_i32_19 = arith.constant 8 : i32
    %46 = arith.muli %c1_i32, %c8_i32_19 : i32
    %47 = tpu.assume_multiple %46, 8 : i32
    %48 = arith.index_cast %47 : i32 to index
    %c0_20 = arith.constant 0 : index
    %49 = vector.load %arg10[%48, %c0_20] : memref<48x384xf32, #tpu.memory_space<vmem>>, vector<8x384xf32>
    %cst_21 = arith.constant dense<0.000000e+00> : vector<8x384xf32>
    %50 = tpu.matmul %43, %7, %cst_21 {dimension_numbers = #tpu.dot_dimension_numbers<[1], [0], [0], [1], [0, 0, 1, 1], [], []>} : vector<8x128xf32>, vector<128x384xf32>, vector<8x384xf32> -> vector<8x384xf32>
    %51 = arith.addf %50, %10 : vector<8x384xf32>
    %52 = vector.extract_strided_slice %49 {offsets = [0, 0], sizes = [8, 128], strides = [1, 1]} : vector<8x384xf32> to vector<8x128xf32>
    %53 = vector.extract_strided_slice %51 {offsets = [0, 0], sizes = [8, 128], strides = [1, 1]} : vector<8x384xf32> to vector<8x128xf32>
    %54 = arith.addf %52, %53 : vector<8x128xf32>
    %55 = arith.negf %54 : vector<8x128xf32>
    %56 = math.exp %55 : vector<8x128xf32>
    %cst_22 = arith.constant 1.000000e+00 : f32
    %57 = vector.broadcast %cst_22 : f32 to vector<8x128xf32>
    %58 = arith.addf %57, %56 : vector<8x128xf32>
    %59 = arith.divf %57, %58 : vector<8x128xf32>
    %60 = vector.extract_strided_slice %49 {offsets = [0, 128], sizes = [8, 128], strides = [1, 1]} : vector<8x384xf32> to vector<8x128xf32>
    %61 = vector.extract_strided_slice %51 {offsets = [0, 128], sizes = [8, 128], strides = [1, 1]} : vector<8x384xf32> to vector<8x128xf32>
    %62 = arith.addf %60, %61 : vector<8x128xf32>
    %63 = arith.negf %62 : vector<8x128xf32>
    %64 = math.exp %63 : vector<8x128xf32>
    %cst_23 = arith.constant 1.000000e+00 : f32
    %65 = vector.broadcast %cst_23 : f32 to vector<8x128xf32>
    %66 = arith.addf %65, %64 : vector<8x128xf32>
    %67 = arith.divf %65, %66 : vector<8x128xf32>
    %68 = vector.extract_strided_slice %49 {offsets = [0, 256], sizes = [8, 128], strides = [1, 1]} : vector<8x384xf32> to vector<8x128xf32>
    %69 = vector.extract_strided_slice %51 {offsets = [0, 256], sizes = [8, 128], strides = [1, 1]} : vector<8x384xf32> to vector<8x128xf32>
    %70 = arith.mulf %59, %69 : vector<8x128xf32>
    %71 = arith.addf %68, %70 : vector<8x128xf32>
    %72 = math.tanh %71 : vector<8x128xf32>
    %cst_24 = arith.constant 1.000000e+00 : f32
    %73 = vector.broadcast %cst_24 : f32 to vector<8x128xf32>
    %74 = arith.subf %73, %67 : vector<8x128xf32>
    %75 = arith.mulf %74, %72 : vector<8x128xf32>
    %76 = arith.mulf %67, %43 : vector<8x128xf32>
    %77 = arith.addf %75, %76 : vector<8x128xf32>
    %78 = arith.index_cast %47 : i32 to index
    %c0_25 = arith.constant 0 : index
    %79 = vector.load %arg11[%78, %c0_25] : memref<48x128xf32, #tpu.memory_space<vmem>>, vector<8x128xf32>
    tpu.vector_store %arg11[%78, %c0_25], %77 {strides = array<i32>} : memref<48x128xf32, #tpu.memory_space<vmem>>, vector<8x128xf32>,
    %c2_i32 = arith.constant 2 : i32
    %c8_i32_26 = arith.constant 8 : i32
    %80 = arith.muli %c2_i32, %c8_i32_26 : i32
    %81 = tpu.assume_multiple %80, 8 : i32
    %82 = arith.index_cast %81 : i32 to index
    %c0_27 = arith.constant 0 : index
    %83 = vector.load %arg10[%82, %c0_27] : memref<48x384xf32, #tpu.memory_space<vmem>>, vector<8x384xf32>
    %cst_28 = arith.constant dense<0.000000e+00> : vector<8x384xf32>
    %84 = tpu.matmul %77, %7, %cst_28 {dimension_numbers = #tpu.dot_dimension_numbers<[1], [0], [0], [1], [0, 0, 1, 1], [], []>} : vector<8x128xf32>, vector<128x384xf32>, vector<8x384xf32> -> vector<8x384xf32>
    %85 = arith.addf %84, %10 : vector<8x384xf32>
    %86 = vector.extract_strided_slice %83 {offsets = [0, 0], sizes = [8, 128], strides = [1, 1]} : vector<8x384xf32> to vector<8x128xf32>
    %87 = vector.extract_strided_slice %85 {offsets = [0, 0], sizes = [8, 128], strides = [1, 1]} : vector<8x384xf32> to vector<8x128xf32>
    %88 = arith.addf %86, %87 : vector<8x128xf32>
    %89 = arith.negf %88 : vector<8x128xf32>
    %90 = math.exp %89 : vector<8x128xf32>
    %cst_29 = arith.constant 1.000000e+00 : f32
    %91 = vector.broadcast %cst_29 : f32 to vector<8x128xf32>
    %92 = arith.addf %91, %90 : vector<8x128xf32>
    %93 = arith.divf %91, %92 : vector<8x128xf32>
    %94 = vector.extract_strided_slice %83 {offsets = [0, 128], sizes = [8, 128], strides = [1, 1]} : vector<8x384xf32> to vector<8x128xf32>
    %95 = vector.extract_strided_slice %85 {offsets = [0, 128], sizes = [8, 128], strides = [1, 1]} : vector<8x384xf32> to vector<8x128xf32>
    %96 = arith.addf %94, %95 : vector<8x128xf32>
    %97 = arith.negf %96 : vector<8x128xf32>
    %98 = math.exp %97 : vector<8x128xf32>
    %cst_30 = arith.constant 1.000000e+00 : f32
    %99 = vector.broadcast %cst_30 : f32 to vector<8x128xf32>
    %100 = arith.addf %99, %98 : vector<8x128xf32>
    %101 = arith.divf %99, %100 : vector<8x128xf32>
    %102 = vector.extract_strided_slice %83 {offsets = [0, 256], sizes = [8, 128], strides = [1, 1]} : vector<8x384xf32> to vector<8x128xf32>
    %103 = vector.extract_strided_slice %85 {offsets = [0, 256], sizes = [8, 128], strides = [1, 1]} : vector<8x384xf32> to vector<8x128xf32>
    %104 = arith.mulf %93, %103 : vector<8x128xf32>
    %105 = arith.addf %102, %104 : vector<8x128xf32>
    %106 = math.tanh %105 : vector<8x128xf32>
    %cst_31 = arith.constant 1.000000e+00 : f32
    %107 = vector.broadcast %cst_31 : f32 to vector<8x128xf32>
    %108 = arith.subf %107, %101 : vector<8x128xf32>
    %109 = arith.mulf %108, %106 : vector<8x128xf32>
    %110 = arith.mulf %101, %77 : vector<8x128xf32>
    %111 = arith.addf %109, %110 : vector<8x128xf32>
    %112 = arith.index_cast %81 : i32 to index
    %c0_32 = arith.constant 0 : index
    %113 = vector.load %arg11[%112, %c0_32] : memref<48x128xf32, #tpu.memory_space<vmem>>, vector<8x128xf32>
    tpu.vector_store %arg11[%112, %c0_32], %111 {strides = array<i32>} : memref<48x128xf32, #tpu.memory_space<vmem>>, vector<8x128xf32>,
    %c3_i32 = arith.constant 3 : i32
    %c8_i32_33 = arith.constant 8 : i32
    %114 = arith.muli %c3_i32, %c8_i32_33 : i32
    %115 = tpu.assume_multiple %114, 8 : i32
    %116 = arith.index_cast %115 : i32 to index
    %c0_34 = arith.constant 0 : index
    %117 = vector.load %arg10[%116, %c0_34] : memref<48x384xf32, #tpu.memory_space<vmem>>, vector<8x384xf32>
    %cst_35 = arith.constant dense<0.000000e+00> : vector<8x384xf32>
    %118 = tpu.matmul %111, %7, %cst_35 {dimension_numbers = #tpu.dot_dimension_numbers<[1], [0], [0], [1], [0, 0, 1, 1], [], []>} : vector<8x128xf32>, vector<128x384xf32>, vector<8x384xf32> -> vector<8x384xf32>
    %119 = arith.addf %118, %10 : vector<8x384xf32>
    %120 = vector.extract_strided_slice %117 {offsets = [0, 0], sizes = [8, 128], strides = [1, 1]} : vector<8x384xf32> to vector<8x128xf32>
    %121 = vector.extract_strided_slice %119 {offsets = [0, 0], sizes = [8, 128], strides = [1, 1]} : vector<8x384xf32> to vector<8x128xf32>
    %122 = arith.addf %120, %121 : vector<8x128xf32>
    %123 = arith.negf %122 : vector<8x128xf32>
    %124 = math.exp %123 : vector<8x128xf32>
    %cst_36 = arith.constant 1.000000e+00 : f32
    %125 = vector.broadcast %cst_36 : f32 to vector<8x128xf32>
    %126 = arith.addf %125, %124 : vector<8x128xf32>
    %127 = arith.divf %125, %126 : vector<8x128xf32>
    %128 = vector.extract_strided_slice %117 {offsets = [0, 128], sizes = [8, 128], strides = [1, 1]} : vector<8x384xf32> to vector<8x128xf32>
    %129 = vector.extract_strided_slice %119 {offsets = [0, 128], sizes = [8, 128], strides = [1, 1]} : vector<8x384xf32> to vector<8x128xf32>
    %130 = arith.addf %128, %129 : vector<8x128xf32>
    %131 = arith.negf %130 : vector<8x128xf32>
    %132 = math.exp %131 : vector<8x128xf32>
    %cst_37 = arith.constant 1.000000e+00 : f32
    %133 = vector.broadcast %cst_37 : f32 to vector<8x128xf32>
    %134 = arith.addf %133, %132 : vector<8x128xf32>
    %135 = arith.divf %133, %134 : vector<8x128xf32>
    %136 = vector.extract_strided_slice %117 {offsets = [0, 256], sizes = [8, 128], strides = [1, 1]} : vector<8x384xf32> to vector<8x128xf32>
    %137 = vector.extract_strided_slice %119 {offsets = [0, 256], sizes = [8, 128], strides = [1, 1]} : vector<8x384xf32> to vector<8x128xf32>
    %138 = arith.mulf %127, %137 : vector<8x128xf32>
    %139 = arith.addf %136, %138 : vector<8x128xf32>
    %140 = math.tanh %139 : vector<8x128xf32>
    %cst_38 = arith.constant 1.000000e+00 : f32
    %141 = vector.broadcast %cst_38 : f32 to vector<8x128xf32>
    %142 = arith.subf %141, %135 : vector<8x128xf32>
    %143 = arith.mulf %142, %140 : vector<8x128xf32>
    %144 = arith.mulf %135, %111 : vector<8x128xf32>
    %145 = arith.addf %143, %144 : vector<8x128xf32>
    %146 = arith.index_cast %115 : i32 to index
    %c0_39 = arith.constant 0 : index
    %147 = vector.load %arg11[%146, %c0_39] : memref<48x128xf32, #tpu.memory_space<vmem>>, vector<8x128xf32>
    tpu.vector_store %arg11[%146, %c0_39], %145 {strides = array<i32>} : memref<48x128xf32, #tpu.memory_space<vmem>>, vector<8x128xf32>,
    %c4_i32 = arith.constant 4 : i32
    %c8_i32_40 = arith.constant 8 : i32
    %148 = arith.muli %c4_i32, %c8_i32_40 : i32
    %149 = tpu.assume_multiple %148, 8 : i32
    %150 = arith.index_cast %149 : i32 to index
    %c0_41 = arith.constant 0 : index
    %151 = vector.load %arg10[%150, %c0_41] : memref<48x384xf32, #tpu.memory_space<vmem>>, vector<8x384xf32>
    %cst_42 = arith.constant dense<0.000000e+00> : vector<8x384xf32>
    %152 = tpu.matmul %145, %7, %cst_42 {dimension_numbers = #tpu.dot_dimension_numbers<[1], [0], [0], [1], [0, 0, 1, 1], [], []>} : vector<8x128xf32>, vector<128x384xf32>, vector<8x384xf32> -> vector<8x384xf32>
    %153 = arith.addf %152, %10 : vector<8x384xf32>
    %154 = vector.extract_strided_slice %151 {offsets = [0, 0], sizes = [8, 128], strides = [1, 1]} : vector<8x384xf32> to vector<8x128xf32>
    %155 = vector.extract_strided_slice %153 {offsets = [0, 0], sizes = [8, 128], strides = [1, 1]} : vector<8x384xf32> to vector<8x128xf32>
    %156 = arith.addf %154, %155 : vector<8x128xf32>
    %157 = arith.negf %156 : vector<8x128xf32>
    %158 = math.exp %157 : vector<8x128xf32>
    %cst_43 = arith.constant 1.000000e+00 : f32
    %159 = vector.broadcast %cst_43 : f32 to vector<8x128xf32>
    %160 = arith.addf %159, %158 : vector<8x128xf32>
    %161 = arith.divf %159, %160 : vector<8x128xf32>
    %162 = vector.extract_strided_slice %151 {offsets = [0, 128], sizes = [8, 128], strides = [1, 1]} : vector<8x384xf32> to vector<8x128xf32>
    %163 = vector.extract_strided_slice %153 {offsets = [0, 128], sizes = [8, 128], strides = [1, 1]} : vector<8x384xf32> to vector<8x128xf32>
    %164 = arith.addf %162, %163 : vector<8x128xf32>
    %165 = arith.negf %164 : vector<8x128xf32>
    %166 = math.exp %165 : vector<8x128xf32>
    %cst_44 = arith.constant 1.000000e+00 : f32
    %167 = vector.broadcast %cst_44 : f32 to vector<8x128xf32>
    %168 = arith.addf %167, %166 : vector<8x128xf32>
    %169 = arith.divf %167, %168 : vector<8x128xf32>
    %170 = vector.extract_strided_slice %151 {offsets = [0, 256], sizes = [8, 128], strides = [1, 1]} : vector<8x384xf32> to vector<8x128xf32>
    %171 = vector.extract_strided_slice %153 {offsets = [0, 256], sizes = [8, 128], strides = [1, 1]} : vector<8x384xf32> to vector<8x128xf32>
    %172 = arith.mulf %161, %171 : vector<8x128xf32>
    %173 = arith.addf %170, %172 : vector<8x128xf32>
    %174 = math.tanh %173 : vector<8x128xf32>
    %cst_45 = arith.constant 1.000000e+00 : f32
    %175 = vector.broadcast %cst_45 : f32 to vector<8x128xf32>
    %176 = arith.subf %175, %169 : vector<8x128xf32>
    %177 = arith.mulf %176, %174 : vector<8x128xf32>
    %178 = arith.mulf %169, %145 : vector<8x128xf32>
    %179 = arith.addf %177, %178 : vector<8x128xf32>
    %180 = arith.index_cast %149 : i32 to index
    %c0_46 = arith.constant 0 : index
    %181 = vector.load %arg11[%180, %c0_46] : memref<48x128xf32, #tpu.memory_space<vmem>>, vector<8x128xf32>
    tpu.vector_store %arg11[%180, %c0_46], %179 {strides = array<i32>} : memref<48x128xf32, #tpu.memory_space<vmem>>, vector<8x128xf32>,
    %c5_i32 = arith.constant 5 : i32
    %c8_i32_47 = arith.constant 8 : i32
    %182 = arith.muli %c5_i32, %c8_i32_47 : i32
    %183 = tpu.assume_multiple %182, 8 : i32
    %184 = arith.index_cast %183 : i32 to index
    %c0_48 = arith.constant 0 : index
    %185 = vector.load %arg10[%184, %c0_48] : memref<48x384xf32, #tpu.memory_space<vmem>>, vector<8x384xf32>
    %cst_49 = arith.constant dense<0.000000e+00> : vector<8x384xf32>
    %186 = tpu.matmul %179, %7, %cst_49 {dimension_numbers = #tpu.dot_dimension_numbers<[1], [0], [0], [1], [0, 0, 1, 1], [], []>} : vector<8x128xf32>, vector<128x384xf32>, vector<8x384xf32> -> vector<8x384xf32>
    %187 = arith.addf %186, %10 : vector<8x384xf32>
    %188 = vector.extract_strided_slice %185 {offsets = [0, 0], sizes = [8, 128], strides = [1, 1]} : vector<8x384xf32> to vector<8x128xf32>
    %189 = vector.extract_strided_slice %187 {offsets = [0, 0], sizes = [8, 128], strides = [1, 1]} : vector<8x384xf32> to vector<8x128xf32>
    %190 = arith.addf %188, %189 : vector<8x128xf32>
    %191 = arith.negf %190 : vector<8x128xf32>
    %192 = math.exp %191 : vector<8x128xf32>
    %cst_50 = arith.constant 1.000000e+00 : f32
    %193 = vector.broadcast %cst_50 : f32 to vector<8x128xf32>
    %194 = arith.addf %193, %192 : vector<8x128xf32>
    %195 = arith.divf %193, %194 : vector<8x128xf32>
    %196 = vector.extract_strided_slice %185 {offsets = [0, 128], sizes = [8, 128], strides = [1, 1]} : vector<8x384xf32> to vector<8x128xf32>
    %197 = vector.extract_strided_slice %187 {offsets = [0, 128], sizes = [8, 128], strides = [1, 1]} : vector<8x384xf32> to vector<8x128xf32>
    %198 = arith.addf %196, %197 : vector<8x128xf32>
    %199 = arith.negf %198 : vector<8x128xf32>
    %200 = math.exp %199 : vector<8x128xf32>
    %cst_51 = arith.constant 1.000000e+00 : f32
    %201 = vector.broadcast %cst_51 : f32 to vector<8x128xf32>
    %202 = arith.addf %201, %200 : vector<8x128xf32>
    %203 = arith.divf %201, %202 : vector<8x128xf32>
    %204 = vector.extract_strided_slice %185 {offsets = [0, 256], sizes = [8, 128], strides = [1, 1]} : vector<8x384xf32> to vector<8x128xf32>
    %205 = vector.extract_strided_slice %187 {offsets = [0, 256], sizes = [8, 128], strides = [1, 1]} : vector<8x384xf32> to vector<8x128xf32>
    %206 = arith.mulf %195, %205 : vector<8x128xf32>
    %207 = arith.addf %204, %206 : vector<8x128xf32>
    %208 = math.tanh %207 : vector<8x128xf32>
    %cst_52 = arith.constant 1.000000e+00 : f32
    %209 = vector.broadcast %cst_52 : f32 to vector<8x128xf32>
    %210 = arith.subf %209, %203 : vector<8x128xf32>
    %211 = arith.mulf %210, %208 : vector<8x128xf32>
    %212 = arith.mulf %203, %179 : vector<8x128xf32>
    %213 = arith.addf %211, %212 : vector<8x128xf32>
    %214 = arith.index_cast %183 : i32 to index
    %c0_53 = arith.constant 0 : index
    %215 = vector.load %arg11[%214, %c0_53] : memref<48x128xf32, #tpu.memory_space<vmem>>, vector<8x128xf32>
    tpu.vector_store %arg11[%214, %c0_53], %213 {strides = array<i32>} : memref<48x128xf32, #tpu.memory_space<vmem>>, vector<8x128xf32>,
    %c6_i32 = arith.constant 6 : i32
    %c0_54 = arith.constant 0 : index
    %c0_55 = arith.constant 0 : index
    %216 = vector.load %arg9[%c0_54, %c0_55] : memref<8x128xf32, #tpu.memory_space<vmem>>, vector<8x128xf32>
    tpu.vector_store %arg9[%c0_54, %c0_55], %213 {strides = array<i32>} : memref<8x128xf32, #tpu.memory_space<vmem>>, vector<8x128xf32>,
    %c0_56 = arith.constant 0 : index
    %c0_57 = arith.constant 0 : index
    %217 = vector.load %arg11[%c0_56, %c0_57] : memref<48x128xf32, #tpu.memory_space<vmem>>, vector<48x128xf32>
    %218 = arith.truncf %217 : vector<48x128xf32> to vector<48x128xbf16>
    %c0_58 = arith.constant 0 : index
    %c0_59 = arith.constant 0 : index
    %219 = vector.load %arg4[%c0_58, %c0_59] : memref<128x128xbf16, #tpu.memory_space<vmem>>, vector<128x128xbf16>
    %cst_60 = arith.constant dense<0.000000e+00> : vector<48x128xf32>
    %220 = tpu.matmul %218, %219, %cst_60 {dimension_numbers = #tpu.dot_dimension_numbers<[1], [0], [0], [1], [0, 0, 1, 1], [], []>} : vector<48x128xbf16>, vector<128x128xbf16>, vector<48x128xf32> -> vector<48x128xf32>
    %c0_61 = arith.constant 0 : index
    %c0_62 = arith.constant 0 : index
    %221 = vector.load %arg7[%c0_61, %c0_62] : memref<1x128xf32, #tpu.memory_space<vmem>>, vector<1x128xf32>
    %222 = vector.broadcast %221 : vector<1x128xf32> to vector<48x128xf32>
    %223 = arith.addf %220, %222 : vector<48x128xf32>
    %c0_63 = arith.constant 0 : index
    %c0_64 = arith.constant 0 : index
    %224 = vector.load %arg8[%c0_63, %c0_64] : memref<48x128xf32, #tpu.memory_space<vmem>>, vector<48x128xf32>
    tpu.vector_store %arg8[%c0_63, %c0_64], %223 {strides = array<i32>} : memref<48x128xf32, #tpu.memory_space<vmem>>, vector<48x128xf32>,
    return
  }
}

</mosaic_0001>

<llo_original>
// kernel: full_layer_forward_seq.1
$region0: #{full_layer_forward_seq.1}
  #allocation0 [shape = 'u32[]', space=smem, size = 0x4, offset = 0x4, fixed_abs, tag = 'smem constant byte address 0x4 - core index']
  #allocation1 [shape = 'u32[144,128]{1,0:T(1,128)}', space=vmem, size = 0x12000, scoped, tag = 'internal scratch']
  #allocation2 [shape = 'f32[48,384]{1,0:T(8,128)}', space=vmem, size = 0x12000, scoped, tag = 'scratch operand']
  #allocation3 [shape = 'f32[48,128]{1,0:T(8,128)}', space=vmem, size = 0x6000, scoped, tag = 'scratch operand']
  %s0 = inlined_call_operand.vmem [shape: bf16[48,128], index: 0, kind: input, shape index: {}]
  %s1 = inlined_call_operand.vmem [shape: f32[8,128], index: 1, kind: input, shape index: {}]
  %s2 = inlined_call_operand.vmem [shape: bf16[128,384], index: 2, kind: input, shape index: {}]
  %s3 = inlined_call_operand.vmem [shape: f32[128,384], index: 3, kind: input, shape index: {}]
  %s4 = inlined_call_operand.vmem [shape: bf16[128,128], index: 4, kind: input, shape index: {}]
  %s5 = inlined_call_operand.vmem [shape: f32[1,384], index: 5, kind: input, shape index: {}]
  %s6 = inlined_call_operand.vmem [shape: f32[1,384], index: 6, kind: input, shape index: {}]
  %s7 = inlined_call_operand.vmem [shape: f32[1,128], index: 7, kind: input, shape index: {}]
  %s8 = inlined_call_operand.hbm [shape: f32[48,128], index: 8, kind: output, shape index: {0}]
  %s9 = inlined_call_operand.hbm [shape: f32[8,128], index: 9, kind: output, shape index: {1}]
  %10 = xla_tuple %s8, %s9
  %s11 = sld [smem:[#allocation0]]
  $region50: #{full_layer_forward_seq.1} parent=0
    _
  %s13 = ssub.s32 1, %s11
  %s14 = scalar_select 0, %s13, %s11
  $region1: #{full_layer_forward_seq.1} parent=0
    #allocation4 [shape = 'u8[24576]{0}', space=vmem, size = 0x6000, scoped, tag = 'output window, operand 0, single buffered']
    #allocation5 [shape = 's32[1]{0}', space=sflag, size = 0x4, scoped, tag = 'scoped memory for full_layer_forward_seq.1']
    #allocation6 [shape = 'u8[4096]{0}', space=vmem, size = 0x1000, scoped, tag = 'output window, operand 1, single buffered']
    #allocation7 [shape = 's32[1]{0}', space=sflag, size = 0x4, scoped, tag = 'scoped memory for full_layer_forward_seq.1']
    %15 = vsyncpa [#allocation5], 0
    %16 = vsyncpa [#allocation7], 0
    // Predicated region
    $region2: #{full_layer_forward_seq.1} parent=1 // pred_check
      _
    $region3: #{full_layer_forward_seq.1} parent=1 // pred_check_branch
      %18 = sbr.rel (0) target = $region5
    $region4: #{full_layer_forward_seq.1} parent=1 // pred_region
      _
    $region5: #{full_layer_forward_seq.1} parent=1 // pred_fallthru
      _
    // Predicated region
    $region6: #{full_layer_forward_seq.1} parent=1 // pred_check
      _
    $region7: #{full_layer_forward_seq.1} parent=1 // pred_check_branch
      %20 = sbr.rel (0) target = $region9
    $region8: #{full_layer_forward_seq.1} parent=1 // pred_region
      _
    $region9: #{full_layer_forward_seq.1} parent=1 // pred_fallthru
      _
    // Predicated region
    $region10: #{full_layer_forward_seq.1} parent=1 // pred_check
      _
    $region11: #{full_layer_forward_seq.1} parent=1 // pred_check_branch
      %22 = sbr.rel (0) target = $region13
    $region12: #{full_layer_forward_seq.1} parent=1 // pred_region
      _
    $region13: #{full_layer_forward_seq.1} parent=1 // pred_fallthru
      _
    // Predicated region
    $region14: #{full_layer_forward_seq.1} parent=1 // pred_check
      _
    $region15: #{full_layer_forward_seq.1} parent=1 // pred_check_branch
      %24 = sbr.rel (0) target = $region17
    $region16: #{full_layer_forward_seq.1} parent=1 // pred_region
      _
    $region17: #{full_layer_forward_seq.1} parent=1 // pred_fallthru
      _
    // Predicated region
    $region18: #{full_layer_forward_seq.1} parent=1 // pred_check
      _
    $region19: #{full_layer_forward_seq.1} parent=1 // pred_check_branch
      %26 = sbr.rel (0) target = $region21
    $region20: #{full_layer_forward_seq.1} parent=1 // pred_region
      _
    $region21: #{full_layer_forward_seq.1} parent=1 // pred_fallthru
      _
    // Predicated region
    $region22: #{full_layer_forward_seq.1} parent=1 // pred_check
      _
    $region23: #{full_layer_forward_seq.1} parent=1 // pred_check_branch
      %28 = sbr.rel (0) target = $region25
    $region24: #{full_layer_forward_seq.1} parent=1 // pred_region
      _
    $region25: #{full_layer_forward_seq.1} parent=1 // pred_fallthru
      _
    // Predicated region
    $region26: #{full_layer_forward_seq.1} parent=1 // pred_check
      _
    $region27: #{full_layer_forward_seq.1} parent=1 // pred_check_branch
      %30 = sbr.rel (0) target = $region29
    $region28: #{full_layer_forward_seq.1} parent=1 // pred_region
      _
    $region29: #{full_layer_forward_seq.1} parent=1 // pred_fallthru
      _
    // Predicated region
    $region30: #{full_layer_forward_seq.1} parent=1 // pred_check
      _
    $region31: #{full_layer_forward_seq.1} parent=1 // pred_check_branch
      %32 = sbr.rel (0) target = $region33
    $region32: #{full_layer_forward_seq.1} parent=1 // pred_region
      _
    $region33: #{full_layer_forward_seq.1} parent=1 // pred_fallthru
      _
    %v34 = vld [vmem:[%s0] sm:$0xf]
    %v35 = vld [vmem:[%s0 + $0x4] sm:$0xf]
    %v36 = vld [vmem:[%s0 + $0x8] sm:$0xf]
    %v37 = vld [vmem:[%s0 + $0xc] sm:$0xf]
    %v38 = vld [vmem:[%s0 + $0x10] sm:$0xf]
    %v39 = vld [vmem:[%s0 + $0x14] sm:$0xf]
    %v40 = vld [vmem:[%s2] sm:$0xff]
    %v41 = vld [vmem:[%s2 + $0x8] sm:$0xf]
    %v42 = vld [vmem:[%s2 + $0xc] sm:$0xff]
    %v43 = vld [vmem:[%s2 + $0x14] sm:$0xf]
    %v44 = vld [vmem:[%s2 + $0x18] sm:$0xff]
    %v45 = vld [vmem:[%s2 + $0x20] sm:$0xf]
    %v46 = vld [vmem:[%s2 + $0x24] sm:$0xff]
    %v47 = vld [vmem:[%s2 + $0x2c] sm:$0xf]
    %v48 = vld [vmem:[%s2 + $0x30] sm:$0xff]
    %v49 = vld [vmem:[%s2 + $0x38] sm:$0xf]
    %v50 = vld [vmem:[%s2 + $0x3c] sm:$0xff]
    %v51 = vld [vmem:[%s2 + $0x44] sm:$0xf]
    %v52 = vld [vmem:[%s2 + $0x48] sm:$0xff]
    %v53 = vld [vmem:[%s2 + $0x50] sm:$0xf]
    %v54 = vld [vmem:[%s2 + $0x54] sm:$0xff]
    %v55 = vld [vmem:[%s2 + $0x5c] sm:$0xf]
    %v56 = vld [vmem:[%s2 + $0x60] sm:$0xff]
    %v57 = vld [vmem:[%s2 + $0x68] sm:$0xf]
    %v58 = vld [vmem:[%s2 + $0x6c] sm:$0xff]
    %v59 = vld [vmem:[%s2 + $0x74] sm:$0xf]
    %v60 = vld [vmem:[%s2 + $0x78] sm:$0xff]
    %v61 = vld [vmem:[%s2 + $0x80] sm:$0xf]
    %v62 = vld [vmem:[%s2 + $0x84] sm:$0xff]
    %v63 = vld [vmem:[%s2 + $0x8c] sm:$0xf]
    %v64 = vld [vmem:[%s2 + $0x90] sm:$0xff]
    %v65 = vld [vmem:[%s2 + $0x98] sm:$0xf]
    %v66 = vld [vmem:[%s2 + $0x9c] sm:$0xff]
    %v67 = vld [vmem:[%s2 + $0xa4] sm:$0xf]
    %v68 = vld [vmem:[%s2 + $0xa8] sm:$0xff]
    %v69 = vld [vmem:[%s2 + $0xb0] sm:$0xf]
    %v70 = vld [vmem:[%s2 + $0xb4] sm:$0xff]
    %v71 = vld [vmem:[%s2 + $0xbc] sm:$0xf]
    %v72 = vld [vmem:[%s5] sm:$0x7]
    %v74 = vlaneseq
    %v75 = vshrl.u32 %v74, 7
    %v76 = vsub.s32 0, %v75
    %v77 = vrot.slane %v72, %v76
    %v78 = vlaneseq
    %v79 = vshrl.u32 %v78, 7
    %v80 = vsub.s32 1, %v79
    %v81 = vrot.slane %v72, %v80
    %v82 = vlaneseq
    %v83 = vshrl.u32 %v82, 7
    %v84 = vsub.s32 2, %v83
    %v85 = vrot.slane %v72, %v84
    %v95 = vunpack.c.l.b16 %v34
    %v96 = vunpack.c.l.b16 %v35
    %v97 = vunpack.c.l.b16 %v36
    %v98 = vunpack.c.l.b16 %v37
    %v99 = vunpack.c.l.b16 %v38
    %v100 = vunpack.c.l.b16 %v39
    %v101 = vpack.c.b16 %v96, %v95
    %v102 = vpack.c.b16 %v98, %v97
    %v103 = vpack.c.b16 %v100, %v99
    %v139 = vunpack.c.l.b16 %v40
    %v140 = vunpack.c.h.b16 %v40
    %v141 = vunpack.c.l.b16 %v41
    %v142 = vunpack.c.l.b16 %v42
    %v143 = vunpack.c.h.b16 %v42
    %v144 = vunpack.c.l.b16 %v43
    %v145 = vunpack.c.l.b16 %v44
    %v146 = vunpack.c.h.b16 %v44
    %v147 = vunpack.c.l.b16 %v45
    %v148 = vunpack.c.l.b16 %v46
    %v149 = vunpack.c.h.b16 %v46
    %v150 = vunpack.c.l.b16 %v47
    %v151 = vunpack.c.l.b16 %v48
    %v152 = vunpack.c.h.b16 %v48
    %v153 = vunpack.c.l.b16 %v49
    %v154 = vunpack.c.l.b16 %v50
    %v155 = vunpack.c.h.b16 %v50
    %v156 = vunpack.c.l.b16 %v51
    %v157 = vunpack.c.l.b16 %v52
    %v158 = vunpack.c.h.b16 %v52
    %v159 = vunpack.c.l.b16 %v53
    %v160 = vunpack.c.l.b16 %v54
    %v161 = vunpack.c.h.b16 %v54
    %v162 = vunpack.c.l.b16 %v55
    %v163 = vunpack.c.l.b16 %v56
    %v164 = vunpack.c.h.b16 %v56
    %v165 = vunpack.c.l.b16 %v57
    %v166 = vunpack.c.l.b16 %v58
    %v167 = vunpack.c.h.b16 %v58
    %v168 = vunpack.c.l.b16 %v59
    %v169 = vunpack.c.l.b16 %v60
    %v170 = vunpack.c.h.b16 %v60
    %v171 = vunpack.c.l.b16 %v61
    %v172 = vunpack.c.l.b16 %v62
    %v173 = vunpack.c.h.b16 %v62
    %v174 = vunpack.c.l.b16 %v63
    %v175 = vunpack.c.l.b16 %v64
    %v176 = vunpack.c.h.b16 %v64
    %v177 = vunpack.c.l.b16 %v65
    %v178 = vunpack.c.l.b16 %v66
    %v179 = vunpack.c.h.b16 %v66
    %v180 = vunpack.c.l.b16 %v67
    %v181 = vunpack.c.l.b16 %v68
    %v182 = vunpack.c.h.b16 %v68
    %v183 = vunpack.c.l.b16 %v69
    %v184 = vunpack.c.l.b16 %v70
    %v185 = vunpack.c.h.b16 %v70
    %v186 = vunpack.c.l.b16 %v71
    %v187 = vpack.c.b16 %v142, %v139
    %v188 = vpack.c.b16 %v143, %v140
    %v189 = vpack.c.b16 %v144, %v141
    %v190 = vpack.c.b16 %v148, %v145
    %v191 = vpack.c.b16 %v149, %v146
    %v192 = vpack.c.b16 %v150, %v147
    %v193 = vpack.c.b16 %v154, %v151
    %v194 = vpack.c.b16 %v155, %v152
    %v195 = vpack.c.b16 %v156, %v153
    %v196 = vpack.c.b16 %v160, %v157
    %v197 = vpack.c.b16 %v161, %v158
    %v198 = vpack.c.b16 %v162, %v159
    %v199 = vpack.c.b16 %v166, %v163
    %v200 = vpack.c.b16 %v167, %v164
    %v201 = vpack.c.b16 %v168, %v165
    %v202 = vpack.c.b16 %v172, %v169
    %v203 = vpack.c.b16 %v173, %v170
    %v204 = vpack.c.b16 %v174, %v171
    %v205 = vpack.c.b16 %v178, %v175
    %v206 = vpack.c.b16 %v179, %v176
    %v207 = vpack.c.b16 %v180, %v177
    %v208 = vpack.c.b16 %v184, %v181
    %v209 = vpack.c.b16 %v185, %v182
    %v210 = vpack.c.b16 %v186, %v183
    %235 = vmatprep.subr.bf16.mxu0 %v188
    %236 = vmatpush1.bf16.msra.mxu0 %v187
    %237 = vmatprep.subr.bf16.mxu0 %v191
    %238 = vmatpush1.bf16.msra.mxu0 %v190
    %239 = vmatprep.subr.bf16.mxu0 %v194
    %240 = vmatpush1.bf16.msra.mxu0 %v193
    %241 = vmatprep.subr.bf16.mxu0 %v197
    %242 = vmatpush1.bf16.msra.mxu0 %v196
    %243 = vmatprep.subr.bf16.mxu0 %v200
    %244 = vmatpush1.bf16.msra.mxu0 %v199
    %245 = vmatprep.subr.bf16.mxu0 %v203
    %246 = vmatpush1.bf16.msra.mxu0 %v202
    %247 = vmatprep.subr.bf16.mxu0 %v206
    %248 = vmatpush1.bf16.msra.mxu0 %v205
    %249 = vmatprep.subr.bf16.mxu0 %v209
    %250 = vmatpush1.bf16.msra.mxu0 %v208
    %251 = vmatprep.subr.bf16.mxu0 0
    %252 = vmatpush1.bf16.msra.mxu0 0
    %253 = vmatprep.subr.bf16.mxu0 0
    %254 = vmatpush1.bf16.msra.mxu0 0
    %255 = vmatprep.subr.bf16.mxu0 0
    %256 = vmatpush1.bf16.msra.mxu0 0
    %257 = vmatprep.subr.bf16.mxu0 0
    %258 = vmatpush1.bf16.msra.mxu0 0
    %259 = vmatprep.subr.bf16.mxu0 0
    %260 = vmatpush1.bf16.msra.mxu0 0
    %261 = vmatprep.subr.bf16.mxu0 0
    %262 = vmatpush1.bf16.msra.mxu0 0
    %263 = vmatprep.subr.bf16.mxu0 0
    %264 = vmatpush1.bf16.msra.mxu0 0
    %265 = vmatprep.subr.bf16.mxu0 0
    %266 = vmatpush1.bf16.msra.mxu0 0
    %267 = vmatprep.mubr.bf16.mxu0 0
    %268 = vmatmul.mubr.bf16.gmra.mrb[0].mxu0 %v101
    %v269 = vpop.f32.mrb[0].mxu0
    %v270 = vadd.f32 %v77, %v269
    %v271 = vpop.f32.mrb[0].mxu0
    %v272 = vadd.f32 %v81, %v271
    %v273 = vpop.f32.mrb[0].mxu0
    %v274 = vadd.f32 %v77, %v273
    %v275 = vpop.f32.mrb[0].mxu0
    %v276 = vadd.f32 %v81, %v275
    %277 = vmatprep.mubr.bf16.mxu0 0
    %278 = vmatmul.mubr.bf16.gmra.mrb[0].mxu0 %v102
    %v279 = vpop.f32.mrb[0].mxu0
    %v280 = vadd.f32 %v77, %v279
    %v281 = vpop.f32.mrb[0].mxu0
    %v282 = vadd.f32 %v81, %v281
    %v283 = vpop.f32.mrb[0].mxu0
    %v284 = vadd.f32 %v77, %v283
    %v285 = vpop.f32.mrb[0].mxu0
    %v286 = vadd.f32 %v81, %v285
    %287 = vmatprep.mubr.bf16.mxu0 0
    %288 = vmatmul.mubr.bf16.gmra.mrb[0].mxu0 %v103
    %v289 = vpop.f32.mrb[0].mxu0
    %v290 = vadd.f32 %v77, %v289
    %v291 = vpop.f32.mrb[0].mxu0
    %v292 = vadd.f32 %v81, %v291
    %v293 = vpop.f32.mrb[0].mxu0
    %v294 = vadd.f32 %v77, %v293
    %v295 = vpop.f32.mrb[0].mxu0
    %v296 = vadd.f32 %v81, %v295
    %297 = vdwg.mxu0
    %298 = vmatprep.subr.bf16.mxu0 0
    %299 = vmatpush1.bf16.msra.mxu0 %v189
    %300 = vmatprep.subr.bf16.mxu0 0
    %301 = vmatpush1.bf16.msra.mxu0 %v192
    %302 = vmatprep.subr.bf16.mxu0 0
    %303 = vmatpush1.bf16.msra.mxu0 %v195
    %304 = vmatprep.subr.bf16.mxu0 0
    %305 = vmatpush1.bf16.msra.mxu0 %v198
    %306 = vmatprep.subr.bf16.mxu0 0
    %307 = vmatpush1.bf16.msra.mxu0 %v201
    %308 = vmatprep.subr.bf16.mxu0 0
    %309 = vmatpush1.bf16.msra.mxu0 %v204
    %310 = vmatprep.subr.bf16.mxu0 0
    %311 = vmatpush1.bf16.msra.mxu0 %v207
    %312 = vmatprep.subr.bf16.mxu0 0
    %313 = vmatpush1.bf16.msra.mxu0 %v210
    %314 = vmatprep.subr.bf16.mxu0 0
    %315 = vmatpush1.bf16.msra.mxu0 0
    %316 = vmatprep.subr.bf16.mxu0 0
    %317 = vmatpush1.bf16.msra.mxu0 0
    %318 = vmatprep.subr.bf16.mxu0 0
    %319 = vmatpush1.bf16.msra.mxu0 0
    %320 = vmatprep.subr.bf16.mxu0 0
    %321 = vmatpush1.bf16.msra.mxu0 0
    %322 = vmatprep.subr.bf16.mxu0 0
    %323 = vmatpush1.bf16.msra.mxu0 0
    %324 = vmatprep.subr.bf16.mxu0 0
    %325 = vmatpush1.bf16.msra.mxu0 0
    %326 = vmatprep.subr.bf16.mxu0 0
    %327 = vmatpush1.bf16.msra.mxu0 0
    %328 = vmatprep.subr.bf16.mxu0 0
    %329 = vmatpush1.bf16.msra.mxu0 0
    %330 = vmatprep.mubr.bf16.mxu0 0
    %331 = vmatmul.mubr.bf16.gmra.mrb[0].mxu0 %v101
    %v332 = vpop.f32.mrb[0].mxu0
    %v333 = vadd.f32 %v85, %v332
    %v334 = vpop.f32.mrb[0].mxu0
    %v335 = vpop.f32.mrb[0].mxu0
    %v336 = vadd.f32 %v85, %v335
    %v337 = vpop.f32.mrb[0].mxu0
    %338 = vmatprep.mubr.bf16.mxu0 0
    %339 = vmatmul.mubr.bf16.gmra.mrb[0].mxu0 %v102
    %v340 = vpop.f32.mrb[0].mxu0
    %v341 = vadd.f32 %v85, %v340
    %v342 = vpop.f32.mrb[0].mxu0
    %v343 = vpop.f32.mrb[0].mxu0
    %v344 = vadd.f32 %v85, %v343
    %v345 = vpop.f32.mrb[0].mxu0
    %346 = vmatprep.mubr.bf16.mxu0 0
    %347 = vmatmul.mubr.bf16.gmra.mrb[0].mxu0 %v103
    %v348 = vpop.f32.mrb[0].mxu0
    %v349 = vadd.f32 %v85, %v348
    %v350 = vpop.f32.mrb[0].mxu0
    %v351 = vpop.f32.mrb[0].mxu0
    %v352 = vadd.f32 %v85, %v351
    %v353 = vpop.f32.mrb[0].mxu0
    %354 = vdwg.mxu0
    %355 = vst [vmem:[#allocation2] sm:$0xff] %v270
    %356 = vst [vmem:[#allocation2 + $0x8] sm:$0xff] %v272
    %357 = vst [vmem:[#allocation2 + $0x10] sm:$0xff] %v333
    %358 = vst [vmem:[#allocation2 + $0x18] sm:$0xff] %v274
    %359 = vst [vmem:[#allocation2 + $0x20] sm:$0xff] %v276
    %360 = vst [vmem:[#allocation2 + $0x28] sm:$0xff] %v336
    %361 = vst [vmem:[#allocation2 + $0x30] sm:$0xff] %v280
    %362 = vst [vmem:[#allocation2 + $0x38] sm:$0xff] %v282
    %363 = vst [vmem:[#allocation2 + $0x40] sm:$0xff] %v341
    %364 = vst [vmem:[#allocation2 + $0x48] sm:$0xff] %v284
    %365 = vst [vmem:[#allocation2 + $0x50] sm:$0xff] %v286
    %366 = vst [vmem:[#allocation2 + $0x58] sm:$0xff] %v344
    %367 = vst [vmem:[#allocation2 + $0x60] sm:$0xff] %v290
    %368 = vst [vmem:[#allocation2 + $0x68] sm:$0xff] %v292
    %369 = vst [vmem:[#allocation2 + $0x70] sm:$0xff] %v349
    %370 = vst [vmem:[#allocation2 + $0x78] sm:$0xff] %v294
    %371 = vst [vmem:[#allocation2 + $0x80] sm:$0xff] %v296
    %372 = vst [vmem:[#allocation2 + $0x88] sm:$0xff] %v352
    %v373 = vld [vmem:[%s3] sm:$0xff]
    %v374 = vld [vmem:[%s3 + $0x8] sm:$0xff]
    %v375 = vld [vmem:[%s3 + $0x10] sm:$0xff]
    %v376 = vld [vmem:[%s3 + $0x18] sm:$0xff]
    %v377 = vld [vmem:[%s3 + $0x20] sm:$0xff]
    %v378 = vld [vmem:[%s3 + $0x28] sm:$0xff]
    %v379 = vld [vmem:[%s3 + $0x30] sm:$0xff]
    %v380 = vld [vmem:[%s3 + $0x38] sm:$0xff]
    %v381 = vld [vmem:[%s3 + $0x40] sm:$0xff]
    %v382 = vld [vmem:[%s3 + $0x48] sm:$0xff]
    %v383 = vld [vmem:[%s3 + $0x50] sm:$0xff]
    %v384 = vld [vmem:[%s3 + $0x58] sm:$0xff]
    %v385 = vld [vmem:[%s3 + $0x60] sm:$0xff]
    %v386 = vld [vmem:[%s3 + $0x68] sm:$0xff]
    %v387 = vld [vmem:[%s3 + $0x70] sm:$0xff]
    %v388 = vld [vmem:[%s3 + $0x78] sm:$0xff]
    %v389 = vld [vmem:[%s3 + $0x80] sm:$0xff]
    %v390 = vld [vmem:[%s3 + $0x88] sm:$0xff]
    %v391 = vld [vmem:[%s3 + $0x90] sm:$0xff]
    %v392 = vld [vmem:[%s3 + $0x98] sm:$0xff]
    %v393 = vld [vmem:[%s3 + $0xa0] sm:$0xff]
    %v394 = vld [vmem:[%s3 + $0xa8] sm:$0xff]
    %v395 = vld [vmem:[%s3 + $0xb0] sm:$0xff]
    %v396 = vld [vmem:[%s3 + $0xb8] sm:$0xff]
    %v397 = vld [vmem:[%s3 + $0xc0] sm:$0xff]
    %v398 = vld [vmem:[%s3 + $0xc8] sm:$0xff]
    %v399 = vld [vmem:[%s3 + $0xd0] sm:$0xff]
    %v400 = vld [vmem:[%s3 + $0xd8] sm:$0xff]
    %v401 = vld [vmem:[%s3 + $0xe0] sm:$0xff]
    %v402 = vld [vmem:[%s3 + $0xe8] sm:$0xff]
    %v403 = vld [vmem:[%s3 + $0xf0] sm:$0xff]
    %v404 = vld [vmem:[%s3 + $0xf8] sm:$0xff]
    %v405 = vld [vmem:[%s3 + $0x100] sm:$0xff]
    %v406 = vld [vmem:[%s3 + $0x108] sm:$0xff]
    %v407 = vld [vmem:[%s3 + $0x110] sm:$0xff]
    %v408 = vld [vmem:[%s3 + $0x118] sm:$0xff]
    %v409 = vld [vmem:[%s3 + $0x120] sm:$0xff]
    %v410 = vld [vmem:[%s3 + $0x128] sm:$0xff]
    %v411 = vld [vmem:[%s3 + $0x130] sm:$0xff]
    %v412 = vld [vmem:[%s3 + $0x138] sm:$0xff]
    %v413 = vld [vmem:[%s3 + $0x140] sm:$0xff]
    %v414 = vld [vmem:[%s3 + $0x148] sm:$0xff]
    %v415 = vld [vmem:[%s3 + $0x150] sm:$0xff]
    %v416 = vld [vmem:[%s3 + $0x158] sm:$0xff]
    %v417 = vld [vmem:[%s3 + $0x160] sm:$0xff]
    %v418 = vld [vmem:[%s3 + $0x168] sm:$0xff]
    %v419 = vld [vmem:[%s3 + $0x170] sm:$0xff]
    %v420 = vld [vmem:[%s3 + $0x178] sm:$0xff]
    %v421 = vld [vmem:[%s6] sm:$0x7]
    %v423 = vlaneseq
    %v424 = vshrl.u32 %v423, 7
    %v425 = vsub.s32 0, %v424
    %v426 = vrot.slane %v421, %v425
    %v427 = vlaneseq
    %v428 = vshrl.u32 %v427, 7
    %v429 = vsub.s32 1, %v428
    %v430 = vrot.slane %v421, %v429
    %v431 = vlaneseq
    %v432 = vshrl.u32 %v431, 7
    %v433 = vsub.s32 2, %v432
    %v434 = vrot.slane %v421, %v433
    %v438 = vld [vmem:[%s1] sm:$0xff]
    %s439 = smul.u32 0, 3
    %s440 = smul.addr %s439, 8
    %s441 = scalar_lea.vmem [#allocation2], %s440
    %v442 = vld [vmem:[%s441] sm:$0xff]
    %v443 = vld [vmem:[%s441 + $0x8] sm:$0xff]
    %v444 = vld [vmem:[%s441 + $0x10] sm:$0xff]
    %445 = vmatprep.subr.mxu0 %v374
    %446 = vmatpush1.msra.mxu0 %v373
    %447 = vmatprep.subr.mxu0 %v377
    %448 = vmatpush1.msra.mxu0 %v376
    %449 = vmatprep.subr.mxu0 %v380
    %450 = vmatpush1.msra.mxu0 %v379
    %451 = vmatprep.subr.mxu0 %v383
    %452 = vmatpush1.msra.mxu0 %v382
    %453 = vmatprep.subr.mxu0 %v386
    %454 = vmatpush1.msra.mxu0 %v385
    %455 = vmatprep.subr.mxu0 %v389
    %456 = vmatpush1.msra.mxu0 %v388
    %457 = vmatprep.subr.mxu0 %v392
    %458 = vmatpush1.msra.mxu0 %v391
    %459 = vmatprep.subr.mxu0 %v395
    %460 = vmatpush1.msra.mxu0 %v394
    %461 = vmatprep.subr.mxu0 %v398
    %462 = vmatpush1.msra.mxu0 %v397
    %463 = vmatprep.subr.mxu0 %v401
    %464 = vmatpush1.msra.mxu0 %v400
    %465 = vmatprep.subr.mxu0 %v404
    %466 = vmatpush1.msra.mxu0 %v403
    %467 = vmatprep.subr.mxu0 %v407
    %468 = vmatpush1.msra.mxu0 %v406
    %469 = vmatprep.subr.mxu0 %v410
    %470 = vmatpush1.msra.mxu0 %v409
    %471 = vmatprep.subr.mxu0 %v413
    %472 = vmatpush1.msra.mxu0 %v412
    %473 = vmatprep.subr.mxu0 %v416
    %474 = vmatpush1.msra.mxu0 %v415
    %475 = vmatprep.subr.mxu0 %v419
    %476 = vmatpush1.msra.mxu0 %v418
    %477 = vmatprep.subr.mxu0 0.0
    %478 = vmatpush1.msra.mxu0 0.0
    %479 = vmatprep.subr.mxu0 0.0
    %480 = vmatpush1.msra.mxu0 0.0
    %481 = vmatprep.subr.mxu0 0.0
    %482 = vmatpush1.msra.mxu0 0.0
    %483 = vmatprep.subr.mxu0 0.0
    %484 = vmatpush1.msra.mxu0 0.0
    %485 = vmatprep.subr.mxu0 0.0
    %486 = vmatpush1.msra.mxu0 0.0
    %487 = vmatprep.subr.mxu0 0.0
    %488 = vmatpush1.msra.mxu0 0.0
    %489 = vmatprep.subr.mxu0 0.0
    %490 = vmatpush1.msra.mxu0 0.0
    %491 = vmatprep.subr.mxu0 0.0
    %492 = vmatpush1.msra.mxu0 0.0
    %493 = vmatprep.subr.mxu0 0.0
    %494 = vmatpush1.msra.mxu0 0.0
    %495 = vmatprep.subr.mxu0 0.0
    %496 = vmatpush1.msra.mxu0 0.0
    %497 = vmatprep.subr.mxu0 0.0
    %498 = vmatpush1.msra.mxu0 0.0
    %499 = vmatprep.subr.mxu0 0.0
    %500 = vmatpush1.msra.mxu0 0.0
    %501 = vmatprep.subr.mxu0 0.0
    %502 = vmatpush1.msra.mxu0 0.0
    %503 = vmatprep.subr.mxu0 0.0
    %504 = vmatpush1.msra.mxu0 0.0
    %505 = vmatprep.subr.mxu0 0.0
    %506 = vmatpush1.msra.mxu0 0.0
    %507 = vmatprep.subr.mxu0 0.0
    %508 = vmatpush1.msra.mxu0 0.0
    %509 = vmatprep.mubr.f32.mxu0 0.0
    %510 = vmatmul.mubr.f32.gmra.mrb[0].mxu0 %v438
    %v511 = vpop.f32.mrb[0].mxu0
    %v512 = vadd.f32 %v426, %v511
    %v513 = vpop.f32.mrb[0].mxu0
    %v514 = vadd.f32 %v430, %v513
    %515 = vdwg.mxu0
    %516 = vmatprep.subr.mxu0 0.0
    %517 = vmatpush1.msra.mxu0 %v375
    %518 = vmatprep.subr.mxu0 0.0
    %519 = vmatpush1.msra.mxu0 %v378
    %520 = vmatprep.subr.mxu0 0.0
    %521 = vmatpush1.msra.mxu0 %v381
    %522 = vmatprep.subr.mxu0 0.0
    %523 = vmatpush1.msra.mxu0 %v384
    %524 = vmatprep.subr.mxu0 0.0
    %525 = vmatpush1.msra.mxu0 %v387
    %526 = vmatprep.subr.mxu0 0.0
    %527 = vmatpush1.msra.mxu0 %v390
    %528 = vmatprep.subr.mxu0 0.0
    %529 = vmatpush1.msra.mxu0 %v393
    %530 = vmatprep.subr.mxu0 0.0
    %531 = vmatpush1.msra.mxu0 %v396
    %532 = vmatprep.subr.mxu0 0.0
    %533 = vmatpush1.msra.mxu0 %v399
    %534 = vmatprep.subr.mxu0 0.0
    %535 = vmatpush1.msra.mxu0 %v402
    %536 = vmatprep.subr.mxu0 0.0
    %537 = vmatpush1.msra.mxu0 %v405
    %538 = vmatprep.subr.mxu0 0.0
    %539 = vmatpush1.msra.mxu0 %v408
    %540 = vmatprep.subr.mxu0 0.0
    %541 = vmatpush1.msra.mxu0 %v411
    %542 = vmatprep.subr.mxu0 0.0
    %543 = vmatpush1.msra.mxu0 %v414
    %544 = vmatprep.subr.mxu0 0.0
    %545 = vmatpush1.msra.mxu0 %v417
    %546 = vmatprep.subr.mxu0 0.0
    %547 = vmatpush1.msra.mxu0 %v420
    %548 = vmatprep.subr.mxu0 0.0
    %549 = vmatpush1.msra.mxu0 0.0
    %550 = vmatprep.subr.mxu0 0.0
    %551 = vmatpush1.msra.mxu0 0.0
    %552 = vmatprep.subr.mxu0 0.0
    %553 = vmatpush1.msra.mxu0 0.0
    %554 = vmatprep.subr.mxu0 0.0
    %555 = vmatpush1.msra.mxu0 0.0
    %556 = vmatprep.subr.mxu0 0.0
    %557 = vmatpush1.msra.mxu0 0.0
    %558 = vmatprep.subr.mxu0 0.0
    %559 = vmatpush1.msra.mxu0 0.0
    %560 = vmatprep.subr.mxu0 0.0
    %561 = vmatpush1.msra.mxu0 0.0
    %562 = vmatprep.subr.mxu0 0.0
    %563 = vmatpush1.msra.mxu0 0.0
    %564 = vmatprep.subr.mxu0 0.0
    %565 = vmatpush1.msra.mxu0 0.0
    %566 = vmatprep.subr.mxu0 0.0
    %567 = vmatpush1.msra.mxu0 0.0
    %568 = vmatprep.subr.mxu0 0.0
    %569 = vmatpush1.msra.mxu0 0.0
    %570 = vmatprep.subr.mxu0 0.0
    %571 = vmatpush1.msra.mxu0 0.0
    %572 = vmatprep.subr.mxu0 0.0
    %573 = vmatpush1.msra.mxu0 0.0
    %574 = vmatprep.subr.mxu0 0.0
    %575 = vmatpush1.msra.mxu0 0.0
    %576 = vmatprep.subr.mxu0 0.0
    %577 = vmatpush1.msra.mxu0 0.0
    %578 = vmatprep.subr.mxu0 0.0
    %579 = vmatpush1.msra.mxu0 0.0
    %580 = vmatprep.mubr.f32.mxu0 0.0
    %581 = vmatmul.mubr.f32.gmra.mrb[0].mxu0 %v438
    %v582 = vpop.f32.mrb[0].mxu0
    %v583 = vadd.f32 %v434, %v582
    %v584 = vpop.f32.mrb[0].mxu0
    %585 = vdwg.mxu0
    %v586 = vadd.f32 %v442, %v512
    %v587 = vxor.u32 %v586, 2147483648
    %v588 = vmul.f32 %v587, 1.442695
    %v589 = vpow.pop %v588
    %v590 = vadd.f32 %v589, 1.0
    %v591 = vrcp.pop %v590
    %v592 = vmul.f32 1.0, %v591
    %v593 = vadd.f32 %v443, %v514
    %v594 = vxor.u32 %v593, 2147483648
    %v595 = vmul.f32 %v594, 1.442695
    %v596 = vpow.pop %v595
    %v597 = vadd.f32 %v596, 1.0
    %v598 = vrcp.pop %v597
    %v599 = vmul.f32 1.0, %v598
    %v600 = vmul.f32 %v592, %v583
    %v601 = vadd.f32 %v444, %v600
    %v602 = vtanh.pop %v601
    %v603 = vsub.f32 1.0, %v599
    %v604 = vmul.f32 %v603, %v602
    %v605 = vmul.f32 %v599, %v438
    %v606 = vadd.f32 %v604, %v605
    %607 = vst [vmem:[#allocation3] sm:$0xff] %v606
    %s608 = smul.u32 1, 3
    %s609 = smul.addr %s608, 8
    %s610 = scalar_lea.vmem [#allocation2], %s609
    %v611 = vld [vmem:[%s610] sm:$0xff]
    %v612 = vld [vmem:[%s610 + $0x8] sm:$0xff]
    %v613 = vld [vmem:[%s610 + $0x10] sm:$0xff]
    %614 = vmatprep.subr.mxu0 %v374
    %615 = vmatpush1.msra.mxu0 %v373
    %616 = vmatprep.subr.mxu0 %v377
    %617 = vmatpush1.msra.mxu0 %v376
    %618 = vmatprep.subr.mxu0 %v380
    %619 = vmatpush1.msra.mxu0 %v379
    %620 = vmatprep.subr.mxu0 %v383
    %621 = vmatpush1.msra.mxu0 %v382
    %622 = vmatprep.subr.mxu0 %v386
    %623 = vmatpush1.msra.mxu0 %v385
    %624 = vmatprep.subr.mxu0 %v389
    %625 = vmatpush1.msra.mxu0 %v388
    %626 = vmatprep.subr.mxu0 %v392
    %627 = vmatpush1.msra.mxu0 %v391
    %628 = vmatprep.subr.mxu0 %v395
    %629 = vmatpush1.msra.mxu0 %v394
    %630 = vmatprep.subr.mxu0 %v398
    %631 = vmatpush1.msra.mxu0 %v397
    %632 = vmatprep.subr.mxu0 %v401
    %633 = vmatpush1.msra.mxu0 %v400
    %634 = vmatprep.subr.mxu0 %v404
    %635 = vmatpush1.msra.mxu0 %v403
    %636 = vmatprep.subr.mxu0 %v407
    %637 = vmatpush1.msra.mxu0 %v406
    %638 = vmatprep.subr.mxu0 %v410
    %639 = vmatpush1.msra.mxu0 %v409
    %640 = vmatprep.subr.mxu0 %v413
    %641 = vmatpush1.msra.mxu0 %v412
    %642 = vmatprep.subr.mxu0 %v416
    %643 = vmatpush1.msra.mxu0 %v415
    %644 = vmatprep.subr.mxu0 %v419
    %645 = vmatpush1.msra.mxu0 %v418
    %646 = vmatprep.subr.mxu0 0.0
    %647 = vmatpush1.msra.mxu0 0.0
    %648 = vmatprep.subr.mxu0 0.0
    %649 = vmatpush1.msra.mxu0 0.0
    %650 = vmatprep.subr.mxu0 0.0
    %651 = vmatpush1.msra.mxu0 0.0
    %652 = vmatprep.subr.mxu0 0.0
    %653 = vmatpush1.msra.mxu0 0.0
    %654 = vmatprep.subr.mxu0 0.0
    %655 = vmatpush1.msra.mxu0 0.0
    %656 = vmatprep.subr.mxu0 0.0
    %657 = vmatpush1.msra.mxu0 0.0
    %658 = vmatprep.subr.mxu0 0.0
    %659 = vmatpush1.msra.mxu0 0.0
    %660 = vmatprep.subr.mxu0 0.0
    %661 = vmatpush1.msra.mxu0 0.0
    %662 = vmatprep.subr.mxu0 0.0
    %663 = vmatpush1.msra.mxu0 0.0
    %664 = vmatprep.subr.mxu0 0.0
    %665 = vmatpush1.msra.mxu0 0.0
    %666 = vmatprep.subr.mxu0 0.0
    %667 = vmatpush1.msra.mxu0 0.0
    %668 = vmatprep.subr.mxu0 0.0
    %669 = vmatpush1.msra.mxu0 0.0
    %670 = vmatprep.subr.mxu0 0.0
    %671 = vmatpush1.msra.mxu0 0.0
    %672 = vmatprep.subr.mxu0 0.0
    %673 = vmatpush1.msra.mxu0 0.0
    %674 = vmatprep.subr.mxu0 0.0
    %675 = vmatpush1.msra.mxu0 0.0
    %676 = vmatprep.subr.mxu0 0.0
    %677 = vmatpush1.msra.mxu0 0.0
    %678 = vmatprep.mubr.f32.mxu0 0.0
    %679 = vmatmul.mubr.f32.gmra.mrb[0].mxu0 %v606
    %v680 = vpop.f32.mrb[0].mxu0
    %v681 = vadd.f32 %v426, %v680
    %v682 = vpop.f32.mrb[0].mxu0
    %v683 = vadd.f32 %v430, %v682
    %684 = vdwg.mxu0
    %685 = vmatprep.subr.mxu0 0.0
    %686 = vmatpush1.msra.mxu0 %v375
    %687 = vmatprep.subr.mxu0 0.0
    %688 = vmatpush1.msra.mxu0 %v378
    %689 = vmatprep.subr.mxu0 0.0
    %690 = vmatpush1.msra.mxu0 %v381
    %691 = vmatprep.subr.mxu0 0.0
    %692 = vmatpush1.msra.mxu0 %v384
    %693 = vmatprep.subr.mxu0 0.0
    %694 = vmatpush1.msra.mxu0 %v387
    %695 = vmatprep.subr.mxu0 0.0
    %696 = vmatpush1.msra.mxu0 %v390
    %697 = vmatprep.subr.mxu0 0.0
    %698 = vmatpush1.msra.mxu0 %v393
    %699 = vmatprep.subr.mxu0 0.0
    %700 = vmatpush1.msra.mxu0 %v396
    %701 = vmatprep.subr.mxu0 0.0
    %702 = vmatpush1.msra.mxu0 %v399
    %703 = vmatprep.subr.mxu0 0.0
    %704 = vmatpush1.msra.mxu0 %v402
    %705 = vmatprep.subr.mxu0 0.0
    %706 = vmatpush1.msra.mxu0 %v405
    %707 = vmatprep.subr.mxu0 0.0
    %708 = vmatpush1.msra.mxu0 %v408
    %709 = vmatprep.subr.mxu0 0.0
    %710 = vmatpush1.msra.mxu0 %v411
    %711 = vmatprep.subr.mxu0 0.0
    %712 = vmatpush1.msra.mxu0 %v414
    %713 = vmatprep.subr.mxu0 0.0
    %714 = vmatpush1.msra.mxu0 %v417
    %715 = vmatprep.subr.mxu0 0.0
    %716 = vmatpush1.msra.mxu0 %v420
    %717 = vmatprep.subr.mxu0 0.0
    %718 = vmatpush1.msra.mxu0 0.0
    %719 = vmatprep.subr.mxu0 0.0
    %720 = vmatpush1.msra.mxu0 0.0
    %721 = vmatprep.subr.mxu0 0.0
    %722 = vmatpush1.msra.mxu0 0.0
    %723 = vmatprep.subr.mxu0 0.0
    %724 = vmatpush1.msra.mxu0 0.0
    %725 = vmatprep.subr.mxu0 0.0
    %726 = vmatpush1.msra.mxu0 0.0
    %727 = vmatprep.subr.mxu0 0.0
    %728 = vmatpush1.msra.mxu0 0.0
    %729 = vmatprep.subr.mxu0 0.0
    %730 = vmatpush1.msra.mxu0 0.0
    %731 = vmatprep.subr.mxu0 0.0
    %732 = vmatpush1.msra.mxu0 0.0
    %733 = vmatprep.subr.mxu0 0.0
    %734 = vmatpush1.msra.mxu0 0.0
    %735 = vmatprep.subr.mxu0 0.0
    %736 = vmatpush1.msra.mxu0 0.0
    %737 = vmatprep.subr.mxu0 0.0
    %738 = vmatpush1.msra.mxu0 0.0
    %739 = vmatprep.subr.mxu0 0.0
    %740 = vmatpush1.msra.mxu0 0.0
    %741 = vmatprep.subr.mxu0 0.0
    %742 = vmatpush1.msra.mxu0 0.0
    %743 = vmatprep.subr.mxu0 0.0
    %744 = vmatpush1.msra.mxu0 0.0
    %745 = vmatprep.subr.mxu0 0.0
    %746 = vmatpush1.msra.mxu0 0.0
    %747 = vmatprep.subr.mxu0 0.0
    %748 = vmatpush1.msra.mxu0 0.0
    %749 = vmatprep.mubr.f32.mxu0 0.0
    %750 = vmatmul.mubr.f32.gmra.mrb[0].mxu0 %v606
    %v751 = vpop.f32.mrb[0].mxu0
    %v752 = vadd.f32 %v434, %v751
    %v753 = vpop.f32.mrb[0].mxu0
    %754 = vdwg.mxu0
    %v755 = vadd.f32 %v611, %v681
    %v756 = vxor.u32 %v755, 2147483648
    %v757 = vmul.f32 %v756, 1.442695
    %v758 = vpow.pop %v757
    %v759 = vadd.f32 %v758, 1.0
    %v760 = vrcp.pop %v759
    %v761 = vmul.f32 1.0, %v760
    %v762 = vadd.f32 %v612, %v683
    %v763 = vxor.u32 %v762, 2147483648
    %v764 = vmul.f32 %v763, 1.442695
    %v765 = vpow.pop %v764
    %v766 = vadd.f32 %v765, 1.0
    %v767 = vrcp.pop %v766
    %v768 = vmul.f32 1.0, %v767
    %v769 = vmul.f32 %v761, %v752
    %v770 = vadd.f32 %v613, %v769
    %v771 = vtanh.pop %v770
    %v772 = vsub.f32 1.0, %v768
    %v773 = vmul.f32 %v772, %v771
    %v774 = vmul.f32 %v768, %v606
    %v775 = vadd.f32 %v773, %v774
    %s776 = scalar_lea.vmem [#allocation3], 8
    %777 = vst [vmem:[%s776] sm:$0xff] %v775
    %s778 = smul.u32 2, 3
    %s779 = smul.addr %s778, 8
    %s780 = scalar_lea.vmem [#allocation2], %s779
    %v781 = vld [vmem:[%s780] sm:$0xff]
    %v782 = vld [vmem:[%s780 + $0x8] sm:$0xff]
    %v783 = vld [vmem:[%s780 + $0x10] sm:$0xff]
    %784 = vmatprep.subr.mxu0 %v374
    %785 = vmatpush1.msra.mxu0 %v373
    %786 = vmatprep.subr.mxu0 %v377
    %787 = vmatpush1.msra.mxu0 %v376
    %788 = vmatprep.subr.mxu0 %v380
    %789 = vmatpush1.msra.mxu0 %v379
    %790 = vmatprep.subr.mxu0 %v383
    %791 = vmatpush1.msra.mxu0 %v382
    %792 = vmatprep.subr.mxu0 %v386
    %793 = vmatpush1.msra.mxu0 %v385
    %794 = vmatprep.subr.mxu0 %v389
    %795 = vmatpush1.msra.mxu0 %v388
    %796 = vmatprep.subr.mxu0 %v392
    %797 = vmatpush1.msra.mxu0 %v391
    %798 = vmatprep.subr.mxu0 %v395
    %799 = vmatpush1.msra.mxu0 %v394
    %800 = vmatprep.subr.mxu0 %v398
    %801 = vmatpush1.msra.mxu0 %v397
    %802 = vmatprep.subr.mxu0 %v401
    %803 = vmatpush1.msra.mxu0 %v400
    %804 = vmatprep.subr.mxu0 %v404
    %805 = vmatpush1.msra.mxu0 %v403
    %806 = vmatprep.subr.mxu0 %v407
    %807 = vmatpush1.msra.mxu0 %v406
    %808 = vmatprep.subr.mxu0 %v410
    %809 = vmatpush1.msra.mxu0 %v409
    %810 = vmatprep.subr.mxu0 %v413
    %811 = vmatpush1.msra.mxu0 %v412
    %812 = vmatprep.subr.mxu0 %v416
    %813 = vmatpush1.msra.mxu0 %v415
    %814 = vmatprep.subr.mxu0 %v419
    %815 = vmatpush1.msra.mxu0 %v418
    %816 = vmatprep.subr.mxu0 0.0
    %817 = vmatpush1.msra.mxu0 0.0
    %818 = vmatprep.subr.mxu0 0.0
    %819 = vmatpush1.msra.mxu0 0.0
    %820 = vmatprep.subr.mxu0 0.0
    %821 = vmatpush1.msra.mxu0 0.0
    %822 = vmatprep.subr.mxu0 0.0
    %823 = vmatpush1.msra.mxu0 0.0
    %824 = vmatprep.subr.mxu0 0.0
    %825 = vmatpush1.msra.mxu0 0.0
    %826 = vmatprep.subr.mxu0 0.0
    %827 = vmatpush1.msra.mxu0 0.0
    %828 = vmatprep.subr.mxu0 0.0
    %829 = vmatpush1.msra.mxu0 0.0
    %830 = vmatprep.subr.mxu0 0.0
    %831 = vmatpush1.msra.mxu0 0.0
    %832 = vmatprep.subr.mxu0 0.0
    %833 = vmatpush1.msra.mxu0 0.0
    %834 = vmatprep.subr.mxu0 0.0
    %835 = vmatpush1.msra.mxu0 0.0
    %836 = vmatprep.subr.mxu0 0.0
    %837 = vmatpush1.msra.mxu0 0.0
    %838 = vmatprep.subr.mxu0 0.0
    %839 = vmatpush1.msra.mxu0 0.0
    %840 = vmatprep.subr.mxu0 0.0
    %841 = vmatpush1.msra.mxu0 0.0
    %842 = vmatprep.subr.mxu0 0.0
    %843 = vmatpush1.msra.mxu0 0.0
    %844 = vmatprep.subr.mxu0 0.0
    %845 = vmatpush1.msra.mxu0 0.0
    %846 = vmatprep.subr.mxu0 0.0
    %847 = vmatpush1.msra.mxu0 0.0
    %848 = vmatprep.mubr.f32.mxu0 0.0
    %849 = vmatmul.mubr.f32.gmra.mrb[0].mxu0 %v775
    %v850 = vpop.f32.mrb[0].mxu0
    %v851 = vadd.f32 %v426, %v850
    %v852 = vpop.f32.mrb[0].mxu0
    %v853 = vadd.f32 %v430, %v852
    %854 = vdwg.mxu0
    %855 = vmatprep.subr.mxu0 0.0
    %856 = vmatpush1.msra.mxu0 %v375
    %857 = vmatprep.subr.mxu0 0.0
    %858 = vmatpush1.msra.mxu0 %v378
    %859 = vmatprep.subr.mxu0 0.0
    %860 = vmatpush1.msra.mxu0 %v381
    %861 = vmatprep.subr.mxu0 0.0
    %862 = vmatpush1.msra.mxu0 %v384
    %863 = vmatprep.subr.mxu0 0.0
    %864 = vmatpush1.msra.mxu0 %v387
    %865 = vmatprep.subr.mxu0 0.0
    %866 = vmatpush1.msra.mxu0 %v390
    %867 = vmatprep.subr.mxu0 0.0
    %868 = vmatpush1.msra.mxu0 %v393
    %869 = vmatprep.subr.mxu0 0.0
    %870 = vmatpush1.msra.mxu0 %v396
    %871 = vmatprep.subr.mxu0 0.0
    %872 = vmatpush1.msra.mxu0 %v399
    %873 = vmatprep.subr.mxu0 0.0
    %874 = vmatpush1.msra.mxu0 %v402
    %875 = vmatprep.subr.mxu0 0.0
    %876 = vmatpush1.msra.mxu0 %v405
    %877 = vmatprep.subr.mxu0 0.0
    %878 = vmatpush1.msra.mxu0 %v408
    %879 = vmatprep.subr.mxu0 0.0
    %880 = vmatpush1.msra.mxu0 %v411
    %881 = vmatprep.subr.mxu0 0.0
    %882 = vmatpush1.msra.mxu0 %v414
    %883 = vmatprep.subr.mxu0 0.0
    %884 = vmatpush1.msra.mxu0 %v417
    %885 = vmatprep.subr.mxu0 0.0
    %886 = vmatpush1.msra.mxu0 %v420
    %887 = vmatprep.subr.mxu0 0.0
    %888 = vmatpush1.msra.mxu0 0.0
    %889 = vmatprep.subr.mxu0 0.0
    %890 = vmatpush1.msra.mxu0 0.0
    %891 = vmatprep.subr.mxu0 0.0
    %892 = vmatpush1.msra.mxu0 0.0
    %893 = vmatprep.subr.mxu0 0.0
    %894 = vmatpush1.msra.mxu0 0.0
    %895 = vmatprep.subr.mxu0 0.0
    %896 = vmatpush1.msra.mxu0 0.0
    %897 = vmatprep.subr.mxu0 0.0
    %898 = vmatpush1.msra.mxu0 0.0
    %899 = vmatprep.subr.mxu0 0.0
    %900 = vmatpush1.msra.mxu0 0.0
    %901 = vmatprep.subr.mxu0 0.0
    %902 = vmatpush1.msra.mxu0 0.0
    %903 = vmatprep.subr.mxu0 0.0
    %904 = vmatpush1.msra.mxu0 0.0
    %905 = vmatprep.subr.mxu0 0.0
    %906 = vmatpush1.msra.mxu0 0.0
    %907 = vmatprep.subr.mxu0 0.0
    %908 = vmatpush1.msra.mxu0 0.0
    %909 = vmatprep.subr.mxu0 0.0
    %910 = vmatpush1.msra.mxu0 0.0
    %911 = vmatprep.subr.mxu0 0.0
    %912 = vmatpush1.msra.mxu0 0.0
    %913 = vmatprep.subr.mxu0 0.0
    %914 = vmatpush1.msra.mxu0 0.0
    %915 = vmatprep.subr.mxu0 0.0
    %916 = vmatpush1.msra.mxu0 0.0
    %917 = vmatprep.subr.mxu0 0.0
    %918 = vmatpush1.msra.mxu0 0.0
    %919 = vmatprep.mubr.f32.mxu0 0.0
    %920 = vmatmul.mubr.f32.gmra.mrb[0].mxu0 %v775
    %v921 = vpop.f32.mrb[0].mxu0
    %v922 = vadd.f32 %v434, %v921
    %v923 = vpop.f32.mrb[0].mxu0
    %924 = vdwg.mxu0
    %v925 = vadd.f32 %v781, %v851
    %v926 = vxor.u32 %v925, 2147483648
    %v927 = vmul.f32 %v926, 1.442695
    %v928 = vpow.pop %v927
    %v929 = vadd.f32 %v928, 1.0
    %v930 = vrcp.pop %v929
    %v931 = vmul.f32 1.0, %v930
    %v932 = vadd.f32 %v782, %v853
    %v933 = vxor.u32 %v932, 2147483648
    %v934 = vmul.f32 %v933, 1.442695
    %v935 = vpow.pop %v934
    %v936 = vadd.f32 %v935, 1.0
    %v937 = vrcp.pop %v936
    %v938 = vmul.f32 1.0, %v937
    %v939 = vmul.f32 %v931, %v922
    %v940 = vadd.f32 %v783, %v939
    %v941 = vtanh.pop %v940
    %v942 = vsub.f32 1.0, %v938
    %v943 = vmul.f32 %v942, %v941
    %v944 = vmul.f32 %v938, %v775
    %v945 = vadd.f32 %v943, %v944
    %s946 = scalar_lea.vmem [#allocation3], 16
    %947 = vst [vmem:[%s946] sm:$0xff] %v945
    %s948 = smul.u32 3, 3
    %s949 = smul.addr %s948, 8
    %s950 = scalar_lea.vmem [#allocation2], %s949
    %v951 = vld [vmem:[%s950] sm:$0xff]
    %v952 = vld [vmem:[%s950 + $0x8] sm:$0xff]
    %v953 = vld [vmem:[%s950 + $0x10] sm:$0xff]
    %954 = vmatprep.subr.mxu0 %v374
    %955 = vmatpush1.msra.mxu0 %v373
    %956 = vmatprep.subr.mxu0 %v377
    %957 = vmatpush1.msra.mxu0 %v376
    %958 = vmatprep.subr.mxu0 %v380
    %959 = vmatpush1.msra.mxu0 %v379
    %960 = vmatprep.subr.mxu0 %v383
    %961 = vmatpush1.msra.mxu0 %v382
    %962 = vmatprep.subr.mxu0 %v386
    %963 = vmatpush1.msra.mxu0 %v385
    %964 = vmatprep.subr.mxu0 %v389
    %965 = vmatpush1.msra.mxu0 %v388
    %966 = vmatprep.subr.mxu0 %v392
    %967 = vmatpush1.msra.mxu0 %v391
    %968 = vmatprep.subr.mxu0 %v395
    %969 = vmatpush1.msra.mxu0 %v394
    %970 = vmatprep.subr.mxu0 %v398
    %971 = vmatpush1.msra.mxu0 %v397
    %972 = vmatprep.subr.mxu0 %v401
    %973 = vmatpush1.msra.mxu0 %v400
    %974 = vmatprep.subr.mxu0 %v404
    %975 = vmatpush1.msra.mxu0 %v403
    %976 = vmatprep.subr.mxu0 %v407
    %977 = vmatpush1.msra.mxu0 %v406
    %978 = vmatprep.subr.mxu0 %v410
    %979 = vmatpush1.msra.mxu0 %v409
    %980 = vmatprep.subr.mxu0 %v413
    %981 = vmatpush1.msra.mxu0 %v412
    %982 = vmatprep.subr.mxu0 %v416
    %983 = vmatpush1.msra.mxu0 %v415
    %984 = vmatprep.subr.mxu0 %v419
    %985 = vmatpush1.msra.mxu0 %v418
    %986 = vmatprep.subr.mxu0 0.0
    %987 = vmatpush1.msra.mxu0 0.0
    %988 = vmatprep.subr.mxu0 0.0
    %989 = vmatpush1.msra.mxu0 0.0
    %990 = vmatprep.subr.mxu0 0.0
    %991 = vmatpush1.msra.mxu0 0.0
    %992 = vmatprep.subr.mxu0 0.0
    %993 = vmatpush1.msra.mxu0 0.0
    %994 = vmatprep.subr.mxu0 0.0
    %995 = vmatpush1.msra.mxu0 0.0
    %996 = vmatprep.subr.mxu0 0.0
    %997 = vmatpush1.msra.mxu0 0.0
    %998 = vmatprep.subr.mxu0 0.0
    %999 = vmatpush1.msra.mxu0 0.0
    %1000 = vmatprep.subr.mxu0 0.0
    %1001 = vmatpush1.msra.mxu0 0.0
    %1002 = vmatprep.subr.mxu0 0.0
    %1003 = vmatpush1.msra.mxu0 0.0
    %1004 = vmatprep.subr.mxu0 0.0
    %1005 = vmatpush1.msra.mxu0 0.0
    %1006 = vmatprep.subr.mxu0 0.0
    %1007 = vmatpush1.msra.mxu0 0.0
    %1008 = vmatprep.subr.mxu0 0.0
    %1009 = vmatpush1.msra.mxu0 0.0
    %1010 = vmatprep.subr.mxu0 0.0
    %1011 = vmatpush1.msra.mxu0 0.0
    %1012 = vmatprep.subr.mxu0 0.0
    %1013 = vmatpush1.msra.mxu0 0.0
    %1014 = vmatprep.subr.mxu0 0.0
    %1015 = vmatpush1.msra.mxu0 0.0
    %1016 = vmatprep.subr.mxu0 0.0
    %1017 = vmatpush1.msra.mxu0 0.0
    %1018 = vmatprep.mubr.f32.mxu0 0.0
    %1019 = vmatmul.mubr.f32.gmra.mrb[0].mxu0 %v945
    %v1020 = vpop.f32.mrb[0].mxu0
    %v1021 = vadd.f32 %v426, %v1020
    %v1022 = vpop.f32.mrb[0].mxu0
    %v1023 = vadd.f32 %v430, %v1022
    %1024 = vdwg.mxu0
    %1025 = vmatprep.subr.mxu0 0.0
    %1026 = vmatpush1.msra.mxu0 %v375
    %1027 = vmatprep.subr.mxu0 0.0
    %1028 = vmatpush1.msra.mxu0 %v378
    %1029 = vmatprep.subr.mxu0 0.0
    %1030 = vmatpush1.msra.mxu0 %v381
    %1031 = vmatprep.subr.mxu0 0.0
    %1032 = vmatpush1.msra.mxu0 %v384
    %1033 = vmatprep.subr.mxu0 0.0
    %1034 = vmatpush1.msra.mxu0 %v387
    %1035 = vmatprep.subr.mxu0 0.0
    %1036 = vmatpush1.msra.mxu0 %v390
    %1037 = vmatprep.subr.mxu0 0.0
    %1038 = vmatpush1.msra.mxu0 %v393
    %1039 = vmatprep.subr.mxu0 0.0
    %1040 = vmatpush1.msra.mxu0 %v396
    %1041 = vmatprep.subr.mxu0 0.0
    %1042 = vmatpush1.msra.mxu0 %v399
    %1043 = vmatprep.subr.mxu0 0.0
    %1044 = vmatpush1.msra.mxu0 %v402
    %1045 = vmatprep.subr.mxu0 0.0
    %1046 = vmatpush1.msra.mxu0 %v405
    %1047 = vmatprep.subr.mxu0 0.0
    %1048 = vmatpush1.msra.mxu0 %v408
    %1049 = vmatprep.subr.mxu0 0.0
    %1050 = vmatpush1.msra.mxu0 %v411
    %1051 = vmatprep.subr.mxu0 0.0
    %1052 = vmatpush1.msra.mxu0 %v414
    %1053 = vmatprep.subr.mxu0 0.0
    %1054 = vmatpush1.msra.mxu0 %v417
    %1055 = vmatprep.subr.mxu0 0.0
    %1056 = vmatpush1.msra.mxu0 %v420
    %1057 = vmatprep.subr.mxu0 0.0
    %1058 = vmatpush1.msra.mxu0 0.0
    %1059 = vmatprep.subr.mxu0 0.0
    %1060 = vmatpush1.msra.mxu0 0.0
    %1061 = vmatprep.subr.mxu0 0.0
    %1062 = vmatpush1.msra.mxu0 0.0
    %1063 = vmatprep.subr.mxu0 0.0
    %1064 = vmatpush1.msra.mxu0 0.0
    %1065 = vmatprep.subr.mxu0 0.0
    %1066 = vmatpush1.msra.mxu0 0.0
    %1067 = vmatprep.subr.mxu0 0.0
    %1068 = vmatpush1.msra.mxu0 0.0
    %1069 = vmatprep.subr.mxu0 0.0
    %1070 = vmatpush1.msra.mxu0 0.0
    %1071 = vmatprep.subr.mxu0 0.0
    %1072 = vmatpush1.msra.mxu0 0.0
    %1073 = vmatprep.subr.mxu0 0.0
    %1074 = vmatpush1.msra.mxu0 0.0
    %1075 = vmatprep.subr.mxu0 0.0
    %1076 = vmatpush1.msra.mxu0 0.0
    %1077 = vmatprep.subr.mxu0 0.0
    %1078 = vmatpush1.msra.mxu0 0.0
    %1079 = vmatprep.subr.mxu0 0.0
    %1080 = vmatpush1.msra.mxu0 0.0
    %1081 = vmatprep.subr.mxu0 0.0
    %1082 = vmatpush1.msra.mxu0 0.0
    %1083 = vmatprep.subr.mxu0 0.0
    %1084 = vmatpush1.msra.mxu0 0.0
    %1085 = vmatprep.subr.mxu0 0.0
    %1086 = vmatpush1.msra.mxu0 0.0
    %1087 = vmatprep.subr.mxu0 0.0
    %1088 = vmatpush1.msra.mxu0 0.0
    %1089 = vmatprep.mubr.f32.mxu0 0.0
    %1090 = vmatmul.mubr.f32.gmra.mrb[0].mxu0 %v945
    %v1091 = vpop.f32.mrb[0].mxu0
    %v1092 = vadd.f32 %v434, %v1091
    %v1093 = vpop.f32.mrb[0].mxu0
    %1094 = vdwg.mxu0
    %v1095 = vadd.f32 %v951, %v1021
    %v1096 = vxor.u32 %v1095, 2147483648
    %v1097 = vmul.f32 %v1096, 1.442695
    %v1098 = vpow.pop %v1097
    %v1099 = vadd.f32 %v1098, 1.0
    %v1100 = vrcp.pop %v1099
    %v1101 = vmul.f32 1.0, %v1100
    %v1102 = vadd.f32 %v952, %v1023
    %v1103 = vxor.u32 %v1102, 2147483648
    %v1104 = vmul.f32 %v1103, 1.442695
    %v1105 = vpow.pop %v1104
    %v1106 = vadd.f32 %v1105, 1.0
    %v1107 = vrcp.pop %v1106
    %v1108 = vmul.f32 1.0, %v1107
    %v1109 = vmul.f32 %v1101, %v1092
    %v1110 = vadd.f32 %v953, %v1109
    %v1111 = vtanh.pop %v1110
    %v1112 = vsub.f32 1.0, %v1108
    %v1113 = vmul.f32 %v1112, %v1111
    %v1114 = vmul.f32 %v1108, %v945
    %v1115 = vadd.f32 %v1113, %v1114
    %s1116 = scalar_lea.vmem [#allocation3], 24
    %1117 = vst [vmem:[%s1116] sm:$0xff] %v1115
    %s1118 = smul.u32 4, 3
    %s1119 = smul.addr %s1118, 8
    %s1120 = scalar_lea.vmem [#allocation2], %s1119
    %v1121 = vld [vmem:[%s1120] sm:$0xff]
    %v1122 = vld [vmem:[%s1120 + $0x8] sm:$0xff]
    %v1123 = vld [vmem:[%s1120 + $0x10] sm:$0xff]
    %1124 = vmatprep.subr.mxu0 %v374
    %1125 = vmatpush1.msra.mxu0 %v373
    %1126 = vmatprep.subr.mxu0 %v377
    %1127 = vmatpush1.msra.mxu0 %v376
    %1128 = vmatprep.subr.mxu0 %v380
    %1129 = vmatpush1.msra.mxu0 %v379
    %1130 = vmatprep.subr.mxu0 %v383
    %1131 = vmatpush1.msra.mxu0 %v382
    %1132 = vmatprep.subr.mxu0 %v386
    %1133 = vmatpush1.msra.mxu0 %v385
    %1134 = vmatprep.subr.mxu0 %v389
    %1135 = vmatpush1.msra.mxu0 %v388
    %1136 = vmatprep.subr.mxu0 %v392
    %1137 = vmatpush1.msra.mxu0 %v391
    %1138 = vmatprep.subr.mxu0 %v395
    %1139 = vmatpush1.msra.mxu0 %v394
    %1140 = vmatprep.subr.mxu0 %v398
    %1141 = vmatpush1.msra.mxu0 %v397
    %1142 = vmatprep.subr.mxu0 %v401
    %1143 = vmatpush1.msra.mxu0 %v400
    %1144 = vmatprep.subr.mxu0 %v404
    %1145 = vmatpush1.msra.mxu0 %v403
    %1146 = vmatprep.subr.mxu0 %v407
    %1147 = vmatpush1.msra.mxu0 %v406
    %1148 = vmatprep.subr.mxu0 %v410
    %1149 = vmatpush1.msra.mxu0 %v409
    %1150 = vmatprep.subr.mxu0 %v413
    %1151 = vmatpush1.msra.mxu0 %v412
    %1152 = vmatprep.subr.mxu0 %v416
    %1153 = vmatpush1.msra.mxu0 %v415
    %1154 = vmatprep.subr.mxu0 %v419
    %1155 = vmatpush1.msra.mxu0 %v418
    %1156 = vmatprep.subr.mxu0 0.0
    %1157 = vmatpush1.msra.mxu0 0.0
    %1158 = vmatprep.subr.mxu0 0.0
    %1159 = vmatpush1.msra.mxu0 0.0
    %1160 = vmatprep.subr.mxu0 0.0
    %1161 = vmatpush1.msra.mxu0 0.0
    %1162 = vmatprep.subr.mxu0 0.0
    %1163 = vmatpush1.msra.mxu0 0.0
    %1164 = vmatprep.subr.mxu0 0.0
    %1165 = vmatpush1.msra.mxu0 0.0
    %1166 = vmatprep.subr.mxu0 0.0
    %1167 = vmatpush1.msra.mxu0 0.0
    %1168 = vmatprep.subr.mxu0 0.0
    %1169 = vmatpush1.msra.mxu0 0.0
    %1170 = vmatprep.subr.mxu0 0.0
    %1171 = vmatpush1.msra.mxu0 0.0
    %1172 = vmatprep.subr.mxu0 0.0
    %1173 = vmatpush1.msra.mxu0 0.0
    %1174 = vmatprep.subr.mxu0 0.0
    %1175 = vmatpush1.msra.mxu0 0.0
    %1176 = vmatprep.subr.mxu0 0.0
    %1177 = vmatpush1.msra.mxu0 0.0
    %1178 = vmatprep.subr.mxu0 0.0
    %1179 = vmatpush1.msra.mxu0 0.0
    %1180 = vmatprep.subr.mxu0 0.0
    %1181 = vmatpush1.msra.mxu0 0.0
    %1182 = vmatprep.subr.mxu0 0.0
    %1183 = vmatpush1.msra.mxu0 0.0
    %1184 = vmatprep.subr.mxu0 0.0
    %1185 = vmatpush1.msra.mxu0 0.0
    %1186 = vmatprep.subr.mxu0 0.0
    %1187 = vmatpush1.msra.mxu0 0.0
    %1188 = vmatprep.mubr.f32.mxu0 0.0
    %1189 = vmatmul.mubr.f32.gmra.mrb[0].mxu0 %v1115
    %v1190 = vpop.f32.mrb[0].mxu0
    %v1191 = vadd.f32 %v426, %v1190
    %v1192 = vpop.f32.mrb[0].mxu0
    %v1193 = vadd.f32 %v430, %v1192
    %1194 = vdwg.mxu0
    %1195 = vmatprep.subr.mxu0 0.0
    %1196 = vmatpush1.msra.mxu0 %v375
    %1197 = vmatprep.subr.mxu0 0.0
    %1198 = vmatpush1.msra.mxu0 %v378
    %1199 = vmatprep.subr.mxu0 0.0
    %1200 = vmatpush1.msra.mxu0 %v381
    %1201 = vmatprep.subr.mxu0 0.0
    %1202 = vmatpush1.msra.mxu0 %v384
    %1203 = vmatprep.subr.mxu0 0.0
    %1204 = vmatpush1.msra.mxu0 %v387
    %1205 = vmatprep.subr.mxu0 0.0
    %1206 = vmatpush1.msra.mxu0 %v390
    %1207 = vmatprep.subr.mxu0 0.0
    %1208 = vmatpush1.msra.mxu0 %v393
    %1209 = vmatprep.subr.mxu0 0.0
    %1210 = vmatpush1.msra.mxu0 %v396
    %1211 = vmatprep.subr.mxu0 0.0
    %1212 = vmatpush1.msra.mxu0 %v399
    %1213 = vmatprep.subr.mxu0 0.0
    %1214 = vmatpush1.msra.mxu0 %v402
    %1215 = vmatprep.subr.mxu0 0.0
    %1216 = vmatpush1.msra.mxu0 %v405
    %1217 = vmatprep.subr.mxu0 0.0
    %1218 = vmatpush1.msra.mxu0 %v408
    %1219 = vmatprep.subr.mxu0 0.0
    %1220 = vmatpush1.msra.mxu0 %v411
    %1221 = vmatprep.subr.mxu0 0.0
    %1222 = vmatpush1.msra.mxu0 %v414
    %1223 = vmatprep.subr.mxu0 0.0
    %1224 = vmatpush1.msra.mxu0 %v417
    %1225 = vmatprep.subr.mxu0 0.0
    %1226 = vmatpush1.msra.mxu0 %v420
    %1227 = vmatprep.subr.mxu0 0.0
    %1228 = vmatpush1.msra.mxu0 0.0
    %1229 = vmatprep.subr.mxu0 0.0
    %1230 = vmatpush1.msra.mxu0 0.0
    %1231 = vmatprep.subr.mxu0 0.0
    %1232 = vmatpush1.msra.mxu0 0.0
    %1233 = vmatprep.subr.mxu0 0.0
    %1234 = vmatpush1.msra.mxu0 0.0
    %1235 = vmatprep.subr.mxu0 0.0
    %1236 = vmatpush1.msra.mxu0 0.0
    %1237 = vmatprep.subr.mxu0 0.0
    %1238 = vmatpush1.msra.mxu0 0.0
    %1239 = vmatprep.subr.mxu0 0.0
    %1240 = vmatpush1.msra.mxu0 0.0
    %1241 = vmatprep.subr.mxu0 0.0
    %1242 = vmatpush1.msra.mxu0 0.0
    %1243 = vmatprep.subr.mxu0 0.0
    %1244 = vmatpush1.msra.mxu0 0.0
    %1245 = vmatprep.subr.mxu0 0.0
    %1246 = vmatpush1.msra.mxu0 0.0
    %1247 = vmatprep.subr.mxu0 0.0
    %1248 = vmatpush1.msra.mxu0 0.0
    %1249 = vmatprep.subr.mxu0 0.0
    %1250 = vmatpush1.msra.mxu0 0.0
    %1251 = vmatprep.subr.mxu0 0.0
    %1252 = vmatpush1.msra.mxu0 0.0
    %1253 = vmatprep.subr.mxu0 0.0
    %1254 = vmatpush1.msra.mxu0 0.0
    %1255 = vmatprep.subr.mxu0 0.0
    %1256 = vmatpush1.msra.mxu0 0.0
    %1257 = vmatprep.subr.mxu0 0.0
    %1258 = vmatpush1.msra.mxu0 0.0
    %1259 = vmatprep.mubr.f32.mxu0 0.0
    %1260 = vmatmul.mubr.f32.gmra.mrb[0].mxu0 %v1115
    %v1261 = vpop.f32.mrb[0].mxu0
    %v1262 = vadd.f32 %v434, %v1261
    %v1263 = vpop.f32.mrb[0].mxu0
    %1264 = vdwg.mxu0
    %v1265 = vadd.f32 %v1121, %v1191
    %v1266 = vxor.u32 %v1265, 2147483648
    %v1267 = vmul.f32 %v1266, 1.442695
    %v1268 = vpow.pop %v1267
    %v1269 = vadd.f32 %v1268, 1.0
    %v1270 = vrcp.pop %v1269
    %v1271 = vmul.f32 1.0, %v1270
    %v1272 = vadd.f32 %v1122, %v1193
    %v1273 = vxor.u32 %v1272, 2147483648
    %v1274 = vmul.f32 %v1273, 1.442695
    %v1275 = vpow.pop %v1274
    %v1276 = vadd.f32 %v1275, 1.0
    %v1277 = vrcp.pop %v1276
    %v1278 = vmul.f32 1.0, %v1277
    %v1279 = vmul.f32 %v1271, %v1262
    %v1280 = vadd.f32 %v1123, %v1279
    %v1281 = vtanh.pop %v1280
    %v1282 = vsub.f32 1.0, %v1278
    %v1283 = vmul.f32 %v1282, %v1281
    %v1284 = vmul.f32 %v1278, %v1115
    %v1285 = vadd.f32 %v1283, %v1284
    %s1286 = scalar_lea.vmem [#allocation3], 32
    %1287 = vst [vmem:[%s1286] sm:$0xff] %v1285
    %s1288 = smul.u32 5, 3
    %s1289 = smul.addr %s1288, 8
    %s1290 = scalar_lea.vmem [#allocation2], %s1289
    %v1291 = vld [vmem:[%s1290] sm:$0xff]
    %v1292 = vld [vmem:[%s1290 + $0x8] sm:$0xff]
    %v1293 = vld [vmem:[%s1290 + $0x10] sm:$0xff]
    %1294 = vmatprep.subr.mxu0 %v374
    %1295 = vmatpush1.msra.mxu0 %v373
    %1296 = vmatprep.subr.mxu0 %v377
    %1297 = vmatpush1.msra.mxu0 %v376
    %1298 = vmatprep.subr.mxu0 %v380
    %1299 = vmatpush1.msra.mxu0 %v379
    %1300 = vmatprep.subr.mxu0 %v383
    %1301 = vmatpush1.msra.mxu0 %v382
    %1302 = vmatprep.subr.mxu0 %v386
    %1303 = vmatpush1.msra.mxu0 %v385
    %1304 = vmatprep.subr.mxu0 %v389
    %1305 = vmatpush1.msra.mxu0 %v388
    %1306 = vmatprep.subr.mxu0 %v392
    %1307 = vmatpush1.msra.mxu0 %v391
    %1308 = vmatprep.subr.mxu0 %v395
    %1309 = vmatpush1.msra.mxu0 %v394
    %1310 = vmatprep.subr.mxu0 %v398
    %1311 = vmatpush1.msra.mxu0 %v397
    %1312 = vmatprep.subr.mxu0 %v401
    %1313 = vmatpush1.msra.mxu0 %v400
    %1314 = vmatprep.subr.mxu0 %v404
    %1315 = vmatpush1.msra.mxu0 %v403
    %1316 = vmatprep.subr.mxu0 %v407
    %1317 = vmatpush1.msra.mxu0 %v406
    %1318 = vmatprep.subr.mxu0 %v410
    %1319 = vmatpush1.msra.mxu0 %v409
    %1320 = vmatprep.subr.mxu0 %v413
    %1321 = vmatpush1.msra.mxu0 %v412
    %1322 = vmatprep.subr.mxu0 %v416
    %1323 = vmatpush1.msra.mxu0 %v415
    %1324 = vmatprep.subr.mxu0 %v419
    %1325 = vmatpush1.msra.mxu0 %v418
    %1326 = vmatprep.subr.mxu0 0.0
    %1327 = vmatpush1.msra.mxu0 0.0
    %1328 = vmatprep.subr.mxu0 0.0
    %1329 = vmatpush1.msra.mxu0 0.0
    %1330 = vmatprep.subr.mxu0 0.0
    %1331 = vmatpush1.msra.mxu0 0.0
    %1332 = vmatprep.subr.mxu0 0.0
    %1333 = vmatpush1.msra.mxu0 0.0
    %1334 = vmatprep.subr.mxu0 0.0
    %1335 = vmatpush1.msra.mxu0 0.0
    %1336 = vmatprep.subr.mxu0 0.0
    %1337 = vmatpush1.msra.mxu0 0.0
    %1338 = vmatprep.subr.mxu0 0.0
    %1339 = vmatpush1.msra.mxu0 0.0
    %1340 = vmatprep.subr.mxu0 0.0
    %1341 = vmatpush1.msra.mxu0 0.0
    %1342 = vmatprep.subr.mxu0 0.0
    %1343 = vmatpush1.msra.mxu0 0.0
    %1344 = vmatprep.subr.mxu0 0.0
    %1345 = vmatpush1.msra.mxu0 0.0
    %1346 = vmatprep.subr.mxu0 0.0
    %1347 = vmatpush1.msra.mxu0 0.0
    %1348 = vmatprep.subr.mxu0 0.0
    %1349 = vmatpush1.msra.mxu0 0.0
    %1350 = vmatprep.subr.mxu0 0.0
    %1351 = vmatpush1.msra.mxu0 0.0
    %1352 = vmatprep.subr.mxu0 0.0
    %1353 = vmatpush1.msra.mxu0 0.0
    %1354 = vmatprep.subr.mxu0 0.0
    %1355 = vmatpush1.msra.mxu0 0.0
    %1356 = vmatprep.subr.mxu0 0.0
    %1357 = vmatpush1.msra.mxu0 0.0
    %1358 = vmatprep.mubr.f32.mxu0 0.0
    %1359 = vmatmul.mubr.f32.gmra.mrb[0].mxu0 %v1285
    %v1360 = vpop.f32.mrb[0].mxu0
    %v1361 = vadd.f32 %v426, %v1360
    %v1362 = vpop.f32.mrb[0].mxu0
    %v1363 = vadd.f32 %v430, %v1362
    %1364 = vdwg.mxu0
    %1365 = vmatprep.subr.mxu0 0.0
    %1366 = vmatpush1.msra.mxu0 %v375
    %1367 = vmatprep.subr.mxu0 0.0
    %1368 = vmatpush1.msra.mxu0 %v378
    %1369 = vmatprep.subr.mxu0 0.0
    %1370 = vmatpush1.msra.mxu0 %v381
    %1371 = vmatprep.subr.mxu0 0.0
    %1372 = vmatpush1.msra.mxu0 %v384
    %1373 = vmatprep.subr.mxu0 0.0
    %1374 = vmatpush1.msra.mxu0 %v387
    %1375 = vmatprep.subr.mxu0 0.0
    %1376 = vmatpush1.msra.mxu0 %v390
    %1377 = vmatprep.subr.mxu0 0.0
    %1378 = vmatpush1.msra.mxu0 %v393
    %1379 = vmatprep.subr.mxu0 0.0
    %1380 = vmatpush1.msra.mxu0 %v396
    %1381 = vmatprep.subr.mxu0 0.0
    %1382 = vmatpush1.msra.mxu0 %v399
    %1383 = vmatprep.subr.mxu0 0.0
    %1384 = vmatpush1.msra.mxu0 %v402
    %1385 = vmatprep.subr.mxu0 0.0
    %1386 = vmatpush1.msra.mxu0 %v405
    %1387 = vmatprep.subr.mxu0 0.0
    %1388 = vmatpush1.msra.mxu0 %v408
    %1389 = vmatprep.subr.mxu0 0.0
    %1390 = vmatpush1.msra.mxu0 %v411
    %1391 = vmatprep.subr.mxu0 0.0
    %1392 = vmatpush1.msra.mxu0 %v414
    %1393 = vmatprep.subr.mxu0 0.0
    %1394 = vmatpush1.msra.mxu0 %v417
    %1395 = vmatprep.subr.mxu0 0.0
    %1396 = vmatpush1.msra.mxu0 %v420
    %1397 = vmatprep.subr.mxu0 0.0
    %1398 = vmatpush1.msra.mxu0 0.0
    %1399 = vmatprep.subr.mxu0 0.0
    %1400 = vmatpush1.msra.mxu0 0.0
    %1401 = vmatprep.subr.mxu0 0.0
    %1402 = vmatpush1.msra.mxu0 0.0
    %1403 = vmatprep.subr.mxu0 0.0
    %1404 = vmatpush1.msra.mxu0 0.0
    %1405 = vmatprep.subr.mxu0 0.0
    %1406 = vmatpush1.msra.mxu0 0.0
    %1407 = vmatprep.subr.mxu0 0.0
    %1408 = vmatpush1.msra.mxu0 0.0
    %1409 = vmatprep.subr.mxu0 0.0
    %1410 = vmatpush1.msra.mxu0 0.0
    %1411 = vmatprep.subr.mxu0 0.0
    %1412 = vmatpush1.msra.mxu0 0.0
    %1413 = vmatprep.subr.mxu0 0.0
    %1414 = vmatpush1.msra.mxu0 0.0
    %1415 = vmatprep.subr.mxu0 0.0
    %1416 = vmatpush1.msra.mxu0 0.0
    %1417 = vmatprep.subr.mxu0 0.0
    %1418 = vmatpush1.msra.mxu0 0.0
    %1419 = vmatprep.subr.mxu0 0.0
    %1420 = vmatpush1.msra.mxu0 0.0
    %1421 = vmatprep.subr.mxu0 0.0
    %1422 = vmatpush1.msra.mxu0 0.0
    %1423 = vmatprep.subr.mxu0 0.0
    %1424 = vmatpush1.msra.mxu0 0.0
    %1425 = vmatprep.subr.mxu0 0.0
    %1426 = vmatpush1.msra.mxu0 0.0
    %1427 = vmatprep.subr.mxu0 0.0
    %1428 = vmatpush1.msra.mxu0 0.0
    %1429 = vmatprep.mubr.f32.mxu0 0.0
    %1430 = vmatmul.mubr.f32.gmra.mrb[0].mxu0 %v1285
    %v1431 = vpop.f32.mrb[0].mxu0
    %v1432 = vadd.f32 %v434, %v1431
    %v1433 = vpop.f32.mrb[0].mxu0
    %1434 = vdwg.mxu0
    %v1435 = vadd.f32 %v1291, %v1361
    %v1436 = vxor.u32 %v1435, 2147483648
    %v1437 = vmul.f32 %v1436, 1.442695
    %v1438 = vpow.pop %v1437
    %v1439 = vadd.f32 %v1438, 1.0
    %v1440 = vrcp.pop %v1439
    %v1441 = vmul.f32 1.0, %v1440
    %v1442 = vadd.f32 %v1292, %v1363
    %v1443 = vxor.u32 %v1442, 2147483648
    %v1444 = vmul.f32 %v1443, 1.442695
    %v1445 = vpow.pop %v1444
    %v1446 = vadd.f32 %v1445, 1.0
    %v1447 = vrcp.pop %v1446
    %v1448 = vmul.f32 1.0, %v1447
    %v1449 = vmul.f32 %v1441, %v1432
    %v1450 = vadd.f32 %v1293, %v1449
    %v1451 = vtanh.pop %v1450
    %v1452 = vsub.f32 1.0, %v1448
    %v1453 = vmul.f32 %v1452, %v1451
    %v1454 = vmul.f32 %v1448, %v1285
    %v1455 = vadd.f32 %v1453, %v1454
    %s1456 = scalar_lea.vmem [#allocation3], 40
    %1457 = vst [vmem:[%s1456] sm:$0xff] %v1455
    %1458 = vst [vmem:[#allocation6] sm:$0xff] %v1455
    %v1459 = vld [vmem:[#allocation3] sm:$0xff]
    %v1460 = vld [vmem:[#allocation3 + $0x8] sm:$0xff]
    %v1461 = vld [vmem:[#allocation3 + $0x10] sm:$0xff]
    %v1462 = vld [vmem:[#allocation3 + $0x18] sm:$0xff]
    %v1463 = vld [vmem:[#allocation3 + $0x20] sm:$0xff]
    %v1464 = vld [vmem:[#allocation3 + $0x28] sm:$0xff]
    %v1465 = vpack.c.bf16 %v1460, %v1459
    %v1466 = vpack.c.bf16 %v1462, %v1461
    %v1467 = vpack.c.bf16 %v1464, %v1463
    %v1468 = vld [vmem:[%s4] sm:$0xf]
    %v1469 = vld [vmem:[%s4 + $0x4] sm:$0xf]
    %v1470 = vld [vmem:[%s4 + $0x8] sm:$0xf]
    %v1471 = vld [vmem:[%s4 + $0xc] sm:$0xf]
    %v1472 = vld [vmem:[%s4 + $0x10] sm:$0xf]
    %v1473 = vld [vmem:[%s4 + $0x14] sm:$0xf]
    %v1474 = vld [vmem:[%s4 + $0x18] sm:$0xf]
    %v1475 = vld [vmem:[%s4 + $0x1c] sm:$0xf]
    %v1476 = vld [vmem:[%s4 + $0x20] sm:$0xf]
    %v1477 = vld [vmem:[%s4 + $0x24] sm:$0xf]
    %v1478 = vld [vmem:[%s4 + $0x28] sm:$0xf]
    %v1479 = vld [vmem:[%s4 + $0x2c] sm:$0xf]
    %v1480 = vld [vmem:[%s4 + $0x30] sm:$0xf]
    %v1481 = vld [vmem:[%s4 + $0x34] sm:$0xf]
    %v1482 = vld [vmem:[%s4 + $0x38] sm:$0xf]
    %v1483 = vld [vmem:[%s4 + $0x3c] sm:$0xf]
    %v1484 = vld [vmem:[%s7] sm:$0x1]
    %v1486 = vlaneseq
    %v1487 = vshrl.u32 %v1486, 7
    %v1488 = vsub.s32 0, %v1487
    %v1489 = vrot.slane %v1484, %v1488
    %v1507 = vunpack.c.l.b16 %v1468
    %v1508 = vunpack.c.l.b16 %v1469
    %v1509 = vunpack.c.l.b16 %v1470
    %v1510 = vunpack.c.l.b16 %v1471
    %v1511 = vunpack.c.l.b16 %v1472
    %v1512 = vunpack.c.l.b16 %v1473
    %v1513 = vunpack.c.l.b16 %v1474
    %v1514 = vunpack.c.l.b16 %v1475
    %v1515 = vunpack.c.l.b16 %v1476
    %v1516 = vunpack.c.l.b16 %v1477
    %v1517 = vunpack.c.l.b16 %v1478
    %v1518 = vunpack.c.l.b16 %v1479
    %v1519 = vunpack.c.l.b16 %v1480
    %v1520 = vunpack.c.l.b16 %v1481
    %v1521 = vunpack.c.l.b16 %v1482
    %v1522 = vunpack.c.l.b16 %v1483
    %v1523 = vpack.c.b16 %v1508, %v1507
    %v1524 = vpack.c.b16 %v1510, %v1509
    %v1525 = vpack.c.b16 %v1512, %v1511
    %v1526 = vpack.c.b16 %v1514, %v1513
    %v1527 = vpack.c.b16 %v1516, %v1515
    %v1528 = vpack.c.b16 %v1518, %v1517
    %v1529 = vpack.c.b16 %v1520, %v1519
    %v1530 = vpack.c.b16 %v1522, %v1521
    %1539 = vmatprep.subr.bf16.mxu0 0
    %1540 = vmatpush1.bf16.msra.mxu0 %v1523
    %1541 = vmatprep.subr.bf16.mxu0 0
    %1542 = vmatpush1.bf16.msra.mxu0 %v1524
    %1543 = vmatprep.subr.bf16.mxu0 0
    %1544 = vmatpush1.bf16.msra.mxu0 %v1525
    %1545 = vmatprep.subr.bf16.mxu0 0
    %1546 = vmatpush1.bf16.msra.mxu0 %v1526
    %1547 = vmatprep.subr.bf16.mxu0 0
    %1548 = vmatpush1.bf16.msra.mxu0 %v1527
    %1549 = vmatprep.subr.bf16.mxu0 0
    %1550 = vmatpush1.bf16.msra.mxu0 %v1528
    %1551 = vmatprep.subr.bf16.mxu0 0
    %1552 = vmatpush1.bf16.msra.mxu0 %v1529
    %1553 = vmatprep.subr.bf16.mxu0 0
    %1554 = vmatpush1.bf16.msra.mxu0 %v1530
    %1555 = vmatprep.subr.bf16.mxu0 0
    %1556 = vmatpush1.bf16.msra.mxu0 0
    %1557 = vmatprep.subr.bf16.mxu0 0
    %1558 = vmatpush1.bf16.msra.mxu0 0
    %1559 = vmatprep.subr.bf16.mxu0 0
    %1560 = vmatpush1.bf16.msra.mxu0 0
    %1561 = vmatprep.subr.bf16.mxu0 0
    %1562 = vmatpush1.bf16.msra.mxu0 0
    %1563 = vmatprep.subr.bf16.mxu0 0
    %1564 = vmatpush1.bf16.msra.mxu0 0
    %1565 = vmatprep.subr.bf16.mxu0 0
    %1566 = vmatpush1.bf16.msra.mxu0 0
    %1567 = vmatprep.subr.bf16.mxu0 0
    %1568 = vmatpush1.bf16.msra.mxu0 0
    %1569 = vmatprep.subr.bf16.mxu0 0
    %1570 = vmatpush1.bf16.msra.mxu0 0
    %1571 = vmatprep.mubr.bf16.mxu0 0
    %1572 = vmatmul.mubr.bf16.gmra.mrb[0].mxu0 %v1465
    %v1573 = vpop.f32.mrb[0].mxu0
    %v1574 = vadd.f32 %v1489, %v1573
    %v1575 = vpop.f32.mrb[0].mxu0
    %v1576 = vpop.f32.mrb[0].mxu0
    %v1577 = vadd.f32 %v1489, %v1576
    %v1578 = vpop.f32.mrb[0].mxu0
    %1579 = vmatprep.mubr.bf16.mxu0 0
    %1580 = vmatmul.mubr.bf16.gmra.mrb[0].mxu0 %v1466
    %v1581 = vpop.f32.mrb[0].mxu0
    %v1582 = vadd.f32 %v1489, %v1581
    %v1583 = vpop.f32.mrb[0].mxu0
    %v1584 = vpop.f32.mrb[0].mxu0
    %v1585 = vadd.f32 %v1489, %v1584
    %v1586 = vpop.f32.mrb[0].mxu0
    %1587 = vmatprep.mubr.bf16.mxu0 0
    %1588 = vmatmul.mubr.bf16.gmra.mrb[0].mxu0 %v1467
    %v1589 = vpop.f32.mrb[0].mxu0
    %v1590 = vadd.f32 %v1489, %v1589
    %v1591 = vpop.f32.mrb[0].mxu0
    %v1592 = vpop.f32.mrb[0].mxu0
    %v1593 = vadd.f32 %v1489, %v1592
    %v1594 = vpop.f32.mrb[0].mxu0
    %1595 = vdwg.mxu0
    %1596 = vst [vmem:[#allocation4] sm:$0xff] %v1574
    %1597 = vst [vmem:[#allocation4 + $0x8] sm:$0xff] %v1577
    %1598 = vst [vmem:[#allocation4 + $0x10] sm:$0xff] %v1582
    %1599 = vst [vmem:[#allocation4 + $0x18] sm:$0xff] %v1585
    %1600 = vst [vmem:[#allocation4 + $0x20] sm:$0xff] %v1590
    %1601 = vst [vmem:[#allocation4 + $0x28] sm:$0xff] %v1593
    // Predicated region
    $region34: #{full_layer_forward_seq.1} parent=1 // pred_check
      _
    $region35: #{full_layer_forward_seq.1} parent=1 // pred_check_branch
      %1603 = sbr.rel (0) target = $region37
    $region36: #{full_layer_forward_seq.1} parent=1 // pred_region
      %s1605 = ssub.s32 768, 768
      %1606 = vsyncadd [#allocation5], %s1605
      %s1607 = sshll.u32 [#allocation4], 4
      %s1608 = int_to_ptr.vmem [resolvable:$true] %s1607
      %1613 = dma.vmem_to_hbm [thread:$0]  %s1608, 768, %s8, [#allocation5], 128, 128, 8
    $region37: #{full_layer_forward_seq.1} parent=1 // pred_fallthru
      _
    // Predicated region
    $region38: #{full_layer_forward_seq.1} parent=1 // pred_check
      _
    $region39: #{full_layer_forward_seq.1} parent=1 // pred_check_branch
      %1615 = sbr.rel (0) target = $region41
    $region40: #{full_layer_forward_seq.1} parent=1 // pred_region
      %s1617 = ssub.s32 128, 128
      %1618 = vsyncadd [#allocation7], %s1617
      %s1620 = sshll.u32 [#allocation6], 4
      %s1621 = int_to_ptr.vmem [resolvable:$true] %s1620
      %1623 = dma.vmem_to_hbm [thread:$0]  %s1621, 128, %s9, [#allocation7]
    $region41: #{full_layer_forward_seq.1} parent=1 // pred_fallthru
      _
    // Predicated region
    $region42: #{full_layer_forward_seq.1} parent=1 // pred_check
      _
    $region43: #{full_layer_forward_seq.1} parent=1 // pred_check_branch
      %1625 = sbr.rel (0) target = $region45
    $region44: #{full_layer_forward_seq.1} parent=1 // pred_region
      %1626 = dma.done [#allocation5], 768
    $region45: #{full_layer_forward_seq.1} parent=1 // pred_fallthru
      _
    // Predicated region
    $region46: #{full_layer_forward_seq.1} parent=1 // pred_check
      _
    $region47: #{full_layer_forward_seq.1} parent=1 // pred_check_branch
      %1628 = sbr.rel (0) target = $region49
    $region48: #{full_layer_forward_seq.1} parent=1 // pred_region
      %1629 = dma.done [#allocation7], 128
    $region49: #{full_layer_forward_seq.1} parent=1 // pred_fallthru
      _
    %1630 = vsyncpa [#allocation5], 1
    %1631 = vsyncpa [#allocation7], 1

</llo_original>
